<compile_context>
chip_gen: v5e
topology: v5e:2x2
jax: 0.10.0
libtpu: 0.0.40
codegen_flags: <defaults>
</compile_context>

<pallas_src>
import math
import functools

import jax
import jax.numpy as jnp
from jax.experimental import pallas as pl
from jax.experimental.pallas import tpu as pltpu


def transformer_layer_kernel(
    x_ref, pos_ref, mask_ref,
    wqk_ref, bqk_ref, wv_ref, bv_ref, wo_ref, bo_ref,
    w1_ref, b1_ref, w2_ref, b2_ref,
    g1_ref, beta1_ref, g2_ref, beta2_ref,
    out_ref,
    *, head_num, att_dim,
):
    f32 = jnp.float32
    bf16 = jnp.bfloat16
    eps = 1e-5

    x = x_ref[...]            # (N, D) f32 -- one batch element per grid step
    pos = pos_ref[...]        # (N, D) f32
    mask = mask_ref[...]      # (N, N) f32 additive attention mask
    n, d = x.shape
    ha = head_num * att_dim
    inv_d = 1.0 / d

    # ---- fused projections: two lane-dense 2-D matmuls (bf16 in, f32 acc) ----
    xp = (x + pos).astype(bf16)
    # q half of wqk/bqk is pre-scaled by 1/sqrt(att_dim) on the wrapper side.
    qk = jnp.dot(xp, wqk_ref[...], preferred_element_type=f32) + bqk_ref[...]   # (N, 2*H*A)
    v = jnp.dot(x.astype(bf16), wv_ref[...],
                preferred_element_type=f32) + bv_ref[...]                        # (N, H*A)
    qk_b = qk.astype(bf16)
    v_b = v.astype(bf16)

    # ---- per-head attention core on static lane slices (no in-kernel reshapes)
    att_cols = []
    for h in range(head_num):
        lo = h * att_dim
        qh = qk_b[:, lo:lo + att_dim]                 # (N, A), already scaled
        kh = qk_b[:, ha + lo:ha + lo + att_dim]       # (N, A)
        vh = v_b[:, lo:lo + att_dim]                  # (N, A)

        s = jnp.einsum('qa,ka->qk', qh, kh, preferred_element_type=f32)  # (N, N)
        s = s + mask
        # Softmax along keys; reciprocal on the EUP slot instead of a divide.
        s = s - jnp.max(s, axis=-1, keepdims=True)
        p = jnp.exp(s)
        p = p * pl.reciprocal(jnp.sum(p, axis=-1, keepdims=True), approx=True)

        att_cols.append(jnp.dot(p.astype(bf16), vh, preferred_element_type=f32))

    # Single lane re-pack of the per-head outputs, then one output projection.
    att = jnp.concatenate(att_cols, axis=-1)                              # (N, H*A)
    att_o = jnp.dot(att.astype(bf16), wo_ref[...],
                    preferred_element_type=f32) + bo_ref[...]             # (N, D)

    # ---- residual + LayerNorm 1 (single-pass moments, clamped variance) ----
    x1 = x + att_o
    mu1 = jnp.sum(x1, axis=-1, keepdims=True) * inv_d
    ex1 = jnp.sum(x1 * x1, axis=-1, keepdims=True) * inv_d
    var1 = jnp.maximum(ex1 - mu1 * mu1, 0.0)
    x1n = (x1 - mu1) * jax.lax.rsqrt(var1 + eps) * g1_ref[...] + beta1_ref[...]

    # ---- FFN: linear -> relu -> linear ----
    h1 = jnp.dot(x1n.astype(bf16), w1_ref[...],
                 preferred_element_type=f32) + b1_ref[...]
    h1 = jnp.maximum(h1, 0.0)
    ffn = jnp.dot(h1.astype(bf16), w2_ref[...],
                  preferred_element_type=f32) + b2_ref[...]

    # ---- residual + LayerNorm 2 ----
    x2 = x1n + ffn
    mu2 = jnp.sum(x2, axis=-1, keepdims=True) * inv_d
    ex2 = jnp.sum(x2 * x2, axis=-1, keepdims=True) * inv_d
    var2 = jnp.maximum(ex2 - mu2 * mu2, 0.0)
    out = (x2 - mu2) * jax.lax.rsqrt(var2 + eps) * g2_ref[...] + beta2_ref[...]

    out_ref[...] = out.astype(out_ref.dtype)


def transformer_layer(x, pos, mask, params, *, head_num, att_dim):
    b, n, d = x.shape
    ha = head_num * att_dim
    ffn_dim = params["w1"].shape[1]
    bf16 = jnp.bfloat16
    inv_sqrt = 1.0 / math.sqrt(att_dim)

    # ---------- wrapper-side layout plumbing (free at XLA level) ----------
    # Fold the softmax scale into wq/bq and fuse the Q and K projections into
    # one (D, 2*H*A) weight applied to (x + pos); wv stays separate (applied
    # to x).  Matmul weights are cast to bf16 once (half the DMA bytes).
    wqk = jnp.concatenate([params["wq"] * inv_sqrt, params["wk"]],
                          axis=-1).astype(bf16)                     # (D, 2*H*A)
    bqk = jnp.concatenate([params["bq"] * inv_sqrt, params["bk"]],
                          axis=-1)                                  # (1, 2*H*A) f32
    wv = params["wv"].astype(bf16)
    wo = params["wo"].astype(bf16)
    w1 = params["w1"].astype(bf16)
    w2 = params["w2"].astype(bf16)

    args = (
        x, pos, mask,
        wqk, bqk, wv, params["bv"], wo, params["bo"],
        w1, params["b1"], w2, params["b2"],
        params["g1"], params["beta1"], params["g2"], params["beta2"],
    )

    # Per-batch blocks for the activations / mask / output; weights are grid
    # invariant and live as whole-array single-buffered VMEM operands.
    full_vmem = pl.BlockSpec(memory_space=pltpu.MemorySpace.VMEM)
    in_specs = [
        pl.BlockSpec((None, n, d), lambda i: (i, 0, 0)),   # x
        pl.BlockSpec((None, n, d), lambda i: (i, 0, 0)),   # pos
        pl.BlockSpec((None, n, n), lambda i: (i, 0, 0)),   # mask
    ] + [full_vmem] * (len(args) - 3)
    out_spec = pl.BlockSpec((None, n, d), lambda i: (i, 0, 0))

    # VMEM limit sized from the actual buffers (generous headroom, still tiny).
    arg_bytes = sum(int(a.size) * a.dtype.itemsize for a in args)
    out_bytes = b * n * d * 4
    vmem_limit = int(max(4 * 1024 * 1024, 8 * (arg_bytes + out_bytes)))

    # Advisory cost estimate for the XLA scheduler.
    flops = b * (
        2 * n * d * (2 * ha)                 # fused Q|K projection
        + 2 * n * d * ha                     # V projection
        + 2 * head_num * n * n * att_dim     # scores
        + 2 * head_num * n * n * att_dim     # att @ v
        + 2 * n * ha * d                     # output projection
        + 2 * n * d * ffn_dim                # FFN linear 1
        + 2 * n * ffn_dim * d                # FFN linear 2
    )
    transcendentals = b * (head_num * n * n + head_num * n + 2 * n)

    kernel = functools.partial(transformer_layer_kernel,
                               head_num=head_num, att_dim=att_dim)

    out = pl.pallas_call(
        kernel,
        out_shape=jax.ShapeDtypeStruct((b, n, d), jnp.float32),
        grid=(b,),
        in_specs=in_specs,
        out_specs=out_spec,
        compiler_params=pltpu.CompilerParams(
            dimension_semantics=("parallel",),
            vmem_limit_bytes=vmem_limit),
        cost_estimate=pl.CostEstimate(
            flops=flops,
            transcendentals=transcendentals,
            bytes_accessed=arg_bytes + out_bytes),
    )(*args)
    return out


def reference_jax(x, pos, mask, params, *, head_num, att_dim):
    """Pure-JAX f32 reference mirroring the PyTorch forward (dropout = identity)."""
    b, n, d = x.shape
    eps = 1e-5
    xp = x + pos
    q = xp @ params["wq"] + params["bq"][0]
    k = xp @ params["wk"] + params["bk"][0]
    v = x @ params["wv"] + params["bv"][0]
    q = q.reshape(b, n, head_num, att_dim).transpose(0, 2, 1, 3)
    k = k.reshape(b, n, head_num, att_dim).transpose(0, 2, 3, 1)
    v = v.reshape(b, n, head_num, att_dim).transpose(0, 2, 1, 3)
    s = jnp.matmul(q, k) / math.sqrt(att_dim) + mask[:, None, :, :]
    att = jax.nn.softmax(s, axis=-1)
    ao = jnp.matmul(att, v).transpose(0, 2, 1, 3).reshape(b, n, head_num * att_dim)
    ao = ao @ params["wo"] + params["bo"][0]
    x1 = x + ao
    mu = x1.mean(-1, keepdims=True)
    var = ((x1 - mu) ** 2).mean(-1, keepdims=True)
    x1n = (x1 - mu) * jax.lax.rsqrt(var + eps) * params["g1"][0] + params["beta1"][0]
    h = jnp.maximum(x1n @ params["w1"] + params["b1"][0], 0.0)
    ffn = h @ params["w2"] + params["b2"][0]
    x2 = x1n + ffn
    mu2 = x2.mean(-1, keepdims=True)
    var2 = ((x2 - mu2) ** 2).mean(-1, keepdims=True)
    return (x2 - mu2) * jax.lax.rsqrt(var2 + eps) * params["g2"][0] + params["beta2"][0]


if __name__ == "__main__":
    # Small shapes consistent with the module.
    B, N, D = 2, 8, 32
    HEAD_NUM, ATT_DIM, FFN_DIM = 4, 8, 64
    HA = HEAD_NUM * ATT_DIM

    key = jax.random.PRNGKey(0)
    keys = jax.random.split(key, 16)

    def lin(kw, kb, fan_in, fan_out):
        bound = 1.0 / math.sqrt(fan_in)
        w = jax.random.uniform(kw, (fan_in, fan_out), jnp.float32, -bound, bound)
        bias = jax.random.uniform(kb, (1, fan_out), jnp.float32, -bound, bound)
        return w, bias

    wq, bq = lin(keys[0], keys[1], D, HA)
    wk, bk = lin(keys[2], keys[3], D, HA)
    wv, bv = lin(keys[4], keys[5], D, HA)
    wo, bo = lin(keys[6], keys[7], HA, D)
    w1, b1 = lin(keys[8], keys[9], D, FFN_DIM)
    w2, b2 = lin(keys[10], keys[11], FFN_DIM, D)

    params = dict(
        wq=wq, bq=bq, wk=wk, bk=bk, wv=wv, bv=bv, wo=wo, bo=bo,
        w1=w1, b1=b1, w2=w2, b2=b2,
        g1=jnp.ones((1, D), jnp.float32), beta1=jnp.zeros((1, D), jnp.float32),
        g2=jnp.ones((1, D), jnp.float32), beta2=jnp.zeros((1, D), jnp.float32),
    )

    x = jax.random.normal(keys[12], (B, N, D), jnp.float32)
    pos = jax.random.normal(keys[13], (B, N, D), jnp.float32)
    # Mild random additive attention mask to exercise the mask path.
    mask = 0.1 * jax.random.normal(keys[14], (B, N, N), jnp.float32)

    out = transformer_layer(x, pos, mask, params,
                            head_num=HEAD_NUM, att_dim=ATT_DIM)
    out = jax.block_until_ready(out)

    ref = reference_jax(x, pos, mask, params,
                        head_num=HEAD_NUM, att_dim=ATT_DIM)
    assert out.shape == (B, N, D)
    # bf16 MXU operands + approx reciprocal vs. an f32 reference -> bf16-level
    # tolerance.
    assert jnp.allclose(out, ref, rtol=5e-2, atol=5e-2), "mismatch vs reference"

    print("KERNEL_OK")
</pallas_src>

<mosaic_0001>
module attributes {stable_mosaic.version = 11 : i64} {
  func.func @transformer_layer_kernel(%arg0: i32, %arg1: memref<1x8x32xf32, #tpu.memory_space<vmem>>, %arg2: memref<1x8x32xf32, #tpu.memory_space<vmem>>, %arg3: memref<1x8x8xf32, #tpu.memory_space<vmem>>, %arg4: memref<32x64xbf16, #tpu.memory_space<vmem>>, %arg5: memref<1x64xf32, #tpu.memory_space<vmem>>, %arg6: memref<32x32xbf16, #tpu.memory_space<vmem>>, %arg7: memref<1x32xf32, #tpu.memory_space<vmem>>, %arg8: memref<32x32xbf16, #tpu.memory_space<vmem>>, %arg9: memref<1x32xf32, #tpu.memory_space<vmem>>, %arg10: memref<32x64xbf16, #tpu.memory_space<vmem>>, %arg11: memref<1x64xf32, #tpu.memory_space<vmem>>, %arg12: memref<64x32xbf16, #tpu.memory_space<vmem>>, %arg13: memref<1x32xf32, #tpu.memory_space<vmem>>, %arg14: memref<1x32xf32, #tpu.memory_space<vmem>>, %arg15: memref<1x32xf32, #tpu.memory_space<vmem>>, %arg16: memref<1x32xf32, #tpu.memory_space<vmem>>, %arg17: memref<1x32xf32, #tpu.memory_space<vmem>>, %arg18: memref<1x8x32xf32, #tpu.memory_space<vmem>>) attributes {dimension_semantics = [#tpu.dimension_semantics<parallel>], iteration_bounds = array<i64: 2>, scalar_prefetch = 0 : i64, scratch_operands = 0 : i64, tpu.core_type = #tpu.core_type<tc>, window_params = [{transform_indices = @transform_0, window_bounds = array<i64: 1, 8, 32>}, {transform_indices = @transform_1, window_bounds = array<i64: 1, 8, 32>}, {transform_indices = @transform_2, window_bounds = array<i64: 1, 8, 8>}, {pipeline_mode = #tpu.pipeline_mode<synchronous>, transform_indices = @transform_3, window_bounds = array<i64: 32, 64>}, {pipeline_mode = #tpu.pipeline_mode<synchronous>, transform_indices = @transform_4, window_bounds = array<i64: 1, 64>}, {pipeline_mode = #tpu.pipeline_mode<synchronous>, transform_indices = @transform_5, window_bounds = array<i64: 32, 32>}, {pipeline_mode = #tpu.pipeline_mode<synchronous>, transform_indices = @transform_6, window_bounds = array<i64: 1, 32>}, {pipeline_mode = #tpu.pipeline_mode<synchronous>, transform_indices = @transform_7, window_bounds = array<i64: 32, 32>}, {pipeline_mode = #tpu.pipeline_mode<synchronous>, transform_indices = @transform_8, window_bounds = array<i64: 1, 32>}, {pipeline_mode = #tpu.pipeline_mode<synchronous>, transform_indices = @transform_9, window_bounds = array<i64: 32, 64>}, {pipeline_mode = #tpu.pipeline_mode<synchronous>, transform_indices = @transform_10, window_bounds = array<i64: 1, 64>}, {pipeline_mode = #tpu.pipeline_mode<synchronous>, transform_indices = @transform_11, window_bounds = array<i64: 64, 32>}, {pipeline_mode = #tpu.pipeline_mode<synchronous>, transform_indices = @transform_12, window_bounds = array<i64: 1, 32>}, {pipeline_mode = #tpu.pipeline_mode<synchronous>, transform_indices = @transform_13, window_bounds = array<i64: 1, 32>}, {pipeline_mode = #tpu.pipeline_mode<synchronous>, transform_indices = @transform_14, window_bounds = array<i64: 1, 32>}, {pipeline_mode = #tpu.pipeline_mode<synchronous>, transform_indices = @transform_15, window_bounds = array<i64: 1, 32>}, {pipeline_mode = #tpu.pipeline_mode<synchronous>, transform_indices = @transform_16, window_bounds = array<i64: 1, 32>}, {transform_indices = @transform_17, window_bounds = array<i64: 1, 8, 32>}]} {
    %c0 = arith.constant 0 : index
    %c0_0 = arith.constant 0 : index
    %c0_1 = arith.constant 0 : index
    %0 = vector.load %arg1[%c0, %c0_0, %c0_1] : memref<1x8x32xf32, #tpu.memory_space<vmem>>, vector<1x8x32xf32>
    %1 = vector.shape_cast %0 : vector<1x8x32xf32> to vector<8x32xf32>
    %c0_2 = arith.constant 0 : index
    %c0_3 = arith.constant 0 : index
    %c0_4 = arith.constant 0 : index
    %2 = vector.load %arg2[%c0_2, %c0_3, %c0_4] : memref<1x8x32xf32, #tpu.memory_space<vmem>>, vector<1x8x32xf32>
    %3 = vector.shape_cast %2 : vector<1x8x32xf32> to vector<8x32xf32>
    %c0_5 = arith.constant 0 : index
    %c0_6 = arith.constant 0 : index
    %c0_7 = arith.constant 0 : index
    %4 = vector.load %arg3[%c0_5, %c0_6, %c0_7] : memref<1x8x8xf32, #tpu.memory_space<vmem>>, vector<1x8x8xf32>
    %5 = vector.shape_cast %4 : vector<1x8x8xf32> to vector<8x8xf32>
    %6 = arith.addf %1, %3 : vector<8x32xf32>
    %7 = arith.truncf %6 : vector<8x32xf32> to vector<8x32xbf16>
    %c0_8 = arith.constant 0 : index
    %c0_9 = arith.constant 0 : index
    %8 = vector.load %arg4[%c0_8, %c0_9] : memref<32x64xbf16, #tpu.memory_space<vmem>>, vector<32x64xbf16>
    %cst = arith.constant dense<0.000000e+00> : vector<8x64xf32>
    %9 = tpu.matmul %7, %8, %cst {dimension_numbers = #tpu.dot_dimension_numbers<[1], [0], [0], [1], [0, 0, 1, 1], [], []>} : vector<8x32xbf16>, vector<32x64xbf16>, vector<8x64xf32> -> vector<8x64xf32>
    %c0_10 = arith.constant 0 : index
    %c0_11 = arith.constant 0 : index
    %10 = vector.load %arg5[%c0_10, %c0_11] : memref<1x64xf32, #tpu.memory_space<vmem>>, vector<1x64xf32>
    %11 = vector.broadcast %10 : vector<1x64xf32> to vector<8x64xf32>
    %12 = arith.addf %9, %11 : vector<8x64xf32>
    %13 = arith.truncf %1 : vector<8x32xf32> to vector<8x32xbf16>
    %c0_12 = arith.constant 0 : index
    %c0_13 = arith.constant 0 : index
    %14 = vector.load %arg6[%c0_12, %c0_13] : memref<32x32xbf16, #tpu.memory_space<vmem>>, vector<32x32xbf16>
    %cst_14 = arith.constant dense<0.000000e+00> : vector<8x32xf32>
    %15 = tpu.matmul %13, %14, %cst_14 {dimension_numbers = #tpu.dot_dimension_numbers<[1], [0], [0], [1], [0, 0, 1, 1], [], []>} : vector<8x32xbf16>, vector<32x32xbf16>, vector<8x32xf32> -> vector<8x32xf32>
    %c0_15 = arith.constant 0 : index
    %c0_16 = arith.constant 0 : index
    %16 = vector.load %arg7[%c0_15, %c0_16] : memref<1x32xf32, #tpu.memory_space<vmem>>, vector<1x32xf32>
    %17 = vector.broadcast %16 : vector<1x32xf32> to vector<8x32xf32>
    %18 = arith.addf %15, %17 : vector<8x32xf32>
    %19 = arith.truncf %12 : vector<8x64xf32> to vector<8x64xbf16>
    %20 = arith.truncf %18 : vector<8x32xf32> to vector<8x32xbf16>
    %21 = vector.extract_strided_slice %19 {offsets = [0, 0], sizes = [8, 8], strides = [1, 1]} : vector<8x64xbf16> to vector<8x8xbf16>
    %22 = vector.extract_strided_slice %19 {offsets = [0, 32], sizes = [8, 8], strides = [1, 1]} : vector<8x64xbf16> to vector<8x8xbf16>
    %23 = vector.extract_strided_slice %20 {offsets = [0, 0], sizes = [8, 8], strides = [1, 1]} : vector<8x32xbf16> to vector<8x8xbf16>
    "tpu.trace_start"() <{level = 10 : i32, message = "qa,ka->qk"}> : () -> ()
    %cst_17 = arith.constant dense<0.000000e+00> : vector<8x8xf32>
    %24 = tpu.matmul %21, %22, %cst_17 {dimension_numbers = #tpu.dot_dimension_numbers<[1], [1], [0], [0], [0, 0, 1, 0], [], []>} : vector<8x8xbf16>, vector<8x8xbf16>, vector<8x8xf32> -> vector<8x8xf32>
    "tpu.trace_stop"() : () -> ()
    %25 = arith.addf %24, %5 : vector<8x8xf32>
    %cst_18 = arith.constant dense<0xFF800000> : vector<8xf32>
    %26 = vector.multi_reduction <maximumf>, %25, %cst_18 [1] : vector<8x8xf32> to vector<8xf32>
    %27 = vector.shape_cast %26 : vector<8xf32> to vector<8x1xf32>
    %28 = vector.broadcast %27 : vector<8x1xf32> to vector<8x8xf32>
    %29 = arith.subf %25, %28 : vector<8x8xf32>
    %30 = math.exp %29 : vector<8x8xf32>
    %cst_19 = arith.constant dense<0.000000e+00> : vector<8xf32>
    %31 = vector.multi_reduction <add>, %30, %cst_19 [1] : vector<8x8xf32> to vector<8xf32>
    %32 = vector.shape_cast %31 : vector<8xf32> to vector<8x1xf32>
    %33 = tpu.reciprocal %32 {approx = true} : vector<8x1xf32> -> vector<8x1xf32>
    %34 = vector.broadcast %33 : vector<8x1xf32> to vector<8x8xf32>
    %35 = arith.mulf %30, %34 : vector<8x8xf32>
    %36 = arith.truncf %35 : vector<8x8xf32> to vector<8x8xbf16>
    %cst_20 = arith.constant dense<0.000000e+00> : vector<8x8xf32>
    %37 = tpu.matmul %36, %23, %cst_20 {dimension_numbers = #tpu.dot_dimension_numbers<[1], [0], [0], [1], [0, 0, 1, 1], [], []>} : vector<8x8xbf16>, vector<8x8xbf16>, vector<8x8xf32> -> vector<8x8xf32>
    %38 = vector.extract_strided_slice %19 {offsets = [0, 8], sizes = [8, 8], strides = [1, 1]} : vector<8x64xbf16> to vector<8x8xbf16>
    %39 = vector.extract_strided_slice %19 {offsets = [0, 40], sizes = [8, 8], strides = [1, 1]} : vector<8x64xbf16> to vector<8x8xbf16>
    %40 = vector.extract_strided_slice %20 {offsets = [0, 8], sizes = [8, 8], strides = [1, 1]} : vector<8x32xbf16> to vector<8x8xbf16>
    "tpu.trace_start"() <{level = 10 : i32, message = "qa,ka->qk"}> : () -> ()
    %cst_21 = arith.constant dense<0.000000e+00> : vector<8x8xf32>
    %41 = tpu.matmul %38, %39, %cst_21 {dimension_numbers = #tpu.dot_dimension_numbers<[1], [1], [0], [0], [0, 0, 1, 0], [], []>} : vector<8x8xbf16>, vector<8x8xbf16>, vector<8x8xf32> -> vector<8x8xf32>
    "tpu.trace_stop"() : () -> ()
    %42 = arith.addf %41, %5 : vector<8x8xf32>
    %cst_22 = arith.constant dense<0xFF800000> : vector<8xf32>
    %43 = vector.multi_reduction <maximumf>, %42, %cst_22 [1] : vector<8x8xf32> to vector<8xf32>
    %44 = vector.shape_cast %43 : vector<8xf32> to vector<8x1xf32>
    %45 = vector.broadcast %44 : vector<8x1xf32> to vector<8x8xf32>
    %46 = arith.subf %42, %45 : vector<8x8xf32>
    %47 = math.exp %46 : vector<8x8xf32>
    %cst_23 = arith.constant dense<0.000000e+00> : vector<8xf32>
    %48 = vector.multi_reduction <add>, %47, %cst_23 [1] : vector<8x8xf32> to vector<8xf32>
    %49 = vector.shape_cast %48 : vector<8xf32> to vector<8x1xf32>
    %50 = tpu.reciprocal %49 {approx = true} : vector<8x1xf32> -> vector<8x1xf32>
    %51 = vector.broadcast %50 : vector<8x1xf32> to vector<8x8xf32>
    %52 = arith.mulf %47, %51 : vector<8x8xf32>
    %53 = arith.truncf %52 : vector<8x8xf32> to vector<8x8xbf16>
    %cst_24 = arith.constant dense<0.000000e+00> : vector<8x8xf32>
    %54 = tpu.matmul %53, %40, %cst_24 {dimension_numbers = #tpu.dot_dimension_numbers<[1], [0], [0], [1], [0, 0, 1, 1], [], []>} : vector<8x8xbf16>, vector<8x8xbf16>, vector<8x8xf32> -> vector<8x8xf32>
    %55 = vector.extract_strided_slice %19 {offsets = [0, 16], sizes = [8, 8], strides = [1, 1]} : vector<8x64xbf16> to vector<8x8xbf16>
    %56 = vector.extract_strided_slice %19 {offsets = [0, 48], sizes = [8, 8], strides = [1, 1]} : vector<8x64xbf16> to vector<8x8xbf16>
    %57 = vector.extract_strided_slice %20 {offsets = [0, 16], sizes = [8, 8], strides = [1, 1]} : vector<8x32xbf16> to vector<8x8xbf16>
    "tpu.trace_start"() <{level = 10 : i32, message = "qa,ka->qk"}> : () -> ()
    %cst_25 = arith.constant dense<0.000000e+00> : vector<8x8xf32>
    %58 = tpu.matmul %55, %56, %cst_25 {dimension_numbers = #tpu.dot_dimension_numbers<[1], [1], [0], [0], [0, 0, 1, 0], [], []>} : vector<8x8xbf16>, vector<8x8xbf16>, vector<8x8xf32> -> vector<8x8xf32>
    "tpu.trace_stop"() : () -> ()
    %59 = arith.addf %58, %5 : vector<8x8xf32>
    %cst_26 = arith.constant dense<0xFF800000> : vector<8xf32>
    %60 = vector.multi_reduction <maximumf>, %59, %cst_26 [1] : vector<8x8xf32> to vector<8xf32>
    %61 = vector.shape_cast %60 : vector<8xf32> to vector<8x1xf32>
    %62 = vector.broadcast %61 : vector<8x1xf32> to vector<8x8xf32>
    %63 = arith.subf %59, %62 : vector<8x8xf32>
    %64 = math.exp %63 : vector<8x8xf32>
    %cst_27 = arith.constant dense<0.000000e+00> : vector<8xf32>
    %65 = vector.multi_reduction <add>, %64, %cst_27 [1] : vector<8x8xf32> to vector<8xf32>
    %66 = vector.shape_cast %65 : vector<8xf32> to vector<8x1xf32>
    %67 = tpu.reciprocal %66 {approx = true} : vector<8x1xf32> -> vector<8x1xf32>
    %68 = vector.broadcast %67 : vector<8x1xf32> to vector<8x8xf32>
    %69 = arith.mulf %64, %68 : vector<8x8xf32>
    %70 = arith.truncf %69 : vector<8x8xf32> to vector<8x8xbf16>
    %cst_28 = arith.constant dense<0.000000e+00> : vector<8x8xf32>
    %71 = tpu.matmul %70, %57, %cst_28 {dimension_numbers = #tpu.dot_dimension_numbers<[1], [0], [0], [1], [0, 0, 1, 1], [], []>} : vector<8x8xbf16>, vector<8x8xbf16>, vector<8x8xf32> -> vector<8x8xf32>
    %72 = vector.extract_strided_slice %19 {offsets = [0, 24], sizes = [8, 8], strides = [1, 1]} : vector<8x64xbf16> to vector<8x8xbf16>
    %73 = vector.extract_strided_slice %19 {offsets = [0, 56], sizes = [8, 8], strides = [1, 1]} : vector<8x64xbf16> to vector<8x8xbf16>
    %74 = vector.extract_strided_slice %20 {offsets = [0, 24], sizes = [8, 8], strides = [1, 1]} : vector<8x32xbf16> to vector<8x8xbf16>
    "tpu.trace_start"() <{level = 10 : i32, message = "qa,ka->qk"}> : () -> ()
    %cst_29 = arith.constant dense<0.000000e+00> : vector<8x8xf32>
    %75 = tpu.matmul %72, %73, %cst_29 {dimension_numbers = #tpu.dot_dimension_numbers<[1], [1], [0], [0], [0, 0, 1, 0], [], []>} : vector<8x8xbf16>, vector<8x8xbf16>, vector<8x8xf32> -> vector<8x8xf32>
    "tpu.trace_stop"() : () -> ()
    %76 = arith.addf %75, %5 : vector<8x8xf32>
    %cst_30 = arith.constant dense<0xFF800000> : vector<8xf32>
    %77 = vector.multi_reduction <maximumf>, %76, %cst_30 [1] : vector<8x8xf32> to vector<8xf32>
    %78 = vector.shape_cast %77 : vector<8xf32> to vector<8x1xf32>
    %79 = vector.broadcast %78 : vector<8x1xf32> to vector<8x8xf32>
    %80 = arith.subf %76, %79 : vector<8x8xf32>
    %81 = math.exp %80 : vector<8x8xf32>
    %cst_31 = arith.constant dense<0.000000e+00> : vector<8xf32>
    %82 = vector.multi_reduction <add>, %81, %cst_31 [1] : vector<8x8xf32> to vector<8xf32>
    %83 = vector.shape_cast %82 : vector<8xf32> to vector<8x1xf32>
    %84 = tpu.reciprocal %83 {approx = true} : vector<8x1xf32> -> vector<8x1xf32>
    %85 = vector.broadcast %84 : vector<8x1xf32> to vector<8x8xf32>
    %86 = arith.mulf %81, %85 : vector<8x8xf32>
    %87 = arith.truncf %86 : vector<8x8xf32> to vector<8x8xbf16>
    %cst_32 = arith.constant dense<0.000000e+00> : vector<8x8xf32>
    %88 = tpu.matmul %87, %74, %cst_32 {dimension_numbers = #tpu.dot_dimension_numbers<[1], [0], [0], [1], [0, 0, 1, 1], [], []>} : vector<8x8xbf16>, vector<8x8xbf16>, vector<8x8xf32> -> vector<8x8xf32>
    %89 = tpu.concatenate %37, %54, %71, %88 in 1 : vector<8x8xf32>, vector<8x8xf32>, vector<8x8xf32>, vector<8x8xf32> -> vector<8x32xf32>
    %90 = arith.truncf %89 : vector<8x32xf32> to vector<8x32xbf16>
    %c0_33 = arith.constant 0 : index
    %c0_34 = arith.constant 0 : index
    %91 = vector.load %arg8[%c0_33, %c0_34] : memref<32x32xbf16, #tpu.memory_space<vmem>>, vector<32x32xbf16>
    %cst_35 = arith.constant dense<0.000000e+00> : vector<8x32xf32>
    %92 = tpu.matmul %90, %91, %cst_35 {dimension_numbers = #tpu.dot_dimension_numbers<[1], [0], [0], [1], [0, 0, 1, 1], [], []>} : vector<8x32xbf16>, vector<32x32xbf16>, vector<8x32xf32> -> vector<8x32xf32>
    %c0_36 = arith.constant 0 : index
    %c0_37 = arith.constant 0 : index
    %93 = vector.load %arg9[%c0_36, %c0_37] : memref<1x32xf32, #tpu.memory_space<vmem>>, vector<1x32xf32>
    %94 = vector.broadcast %93 : vector<1x32xf32> to vector<8x32xf32>
    %95 = arith.addf %92, %94 : vector<8x32xf32>
    %96 = arith.addf %1, %95 : vector<8x32xf32>
    %cst_38 = arith.constant dense<0.000000e+00> : vector<8xf32>
    %97 = vector.multi_reduction <add>, %96, %cst_38 [1] : vector<8x32xf32> to vector<8xf32>
    %98 = vector.shape_cast %97 : vector<8xf32> to vector<8x1xf32>
    %cst_39 = arith.constant 3.125000e-02 : f32
    %99 = vector.broadcast %cst_39 : f32 to vector<8x1xf32>
    %100 = arith.mulf %98, %99 : vector<8x1xf32>
    %101 = arith.mulf %96, %96 : vector<8x32xf32>
    %cst_40 = arith.constant dense<0.000000e+00> : vector<8xf32>
    %102 = vector.multi_reduction <add>, %101, %cst_40 [1] : vector<8x32xf32> to vector<8xf32>
    %103 = vector.shape_cast %102 : vector<8xf32> to vector<8x1xf32>
    %cst_41 = arith.constant 3.125000e-02 : f32
    %104 = vector.broadcast %cst_41 : f32 to vector<8x1xf32>
    %105 = arith.mulf %103, %104 : vector<8x1xf32>
    %106 = arith.mulf %100, %100 : vector<8x1xf32>
    %107 = arith.subf %105, %106 : vector<8x1xf32>
    %cst_42 = arith.constant 0.000000e+00 : f32
    %108 = vector.broadcast %cst_42 : f32 to vector<8x1xf32>
    %109 = arith.maximumf %107, %108 : vector<8x1xf32>
    %110 = vector.broadcast %100 : vector<8x1xf32> to vector<8x32xf32>
    %111 = arith.subf %96, %110 : vector<8x32xf32>
    %cst_43 = arith.constant 9.99999974E-6 : f32
    %112 = vector.broadcast %cst_43 : f32 to vector<8x1xf32>
    %113 = arith.addf %109, %112 : vector<8x1xf32>
    %114 = math.rsqrt %113 : vector<8x1xf32>
    %115 = vector.broadcast %114 : vector<8x1xf32> to vector<8x32xf32>
    %116 = arith.mulf %111, %115 : vector<8x32xf32>
    %c0_44 = arith.constant 0 : index
    %c0_45 = arith.constant 0 : index
    %117 = vector.load %arg14[%c0_44, %c0_45] : memref<1x32xf32, #tpu.memory_space<vmem>>, vector<1x32xf32>
    %118 = vector.broadcast %117 : vector<1x32xf32> to vector<8x32xf32>
    %119 = arith.mulf %116, %118 : vector<8x32xf32>
    %c0_46 = arith.constant 0 : index
    %c0_47 = arith.constant 0 : index
    %120 = vector.load %arg15[%c0_46, %c0_47] : memref<1x32xf32, #tpu.memory_space<vmem>>, vector<1x32xf32>
    %121 = vector.broadcast %120 : vector<1x32xf32> to vector<8x32xf32>
    %122 = arith.addf %119, %121 : vector<8x32xf32>
    %123 = arith.truncf %122 : vector<8x32xf32> to vector<8x32xbf16>
    %c0_48 = arith.constant 0 : index
    %c0_49 = arith.constant 0 : index
    %124 = vector.load %arg10[%c0_48, %c0_49] : memref<32x64xbf16, #tpu.memory_space<vmem>>, vector<32x64xbf16>
    %cst_50 = arith.constant dense<0.000000e+00> : vector<8x64xf32>
    %125 = tpu.matmul %123, %124, %cst_50 {dimension_numbers = #tpu.dot_dimension_numbers<[1], [0], [0], [1], [0, 0, 1, 1], [], []>} : vector<8x32xbf16>, vector<32x64xbf16>, vector<8x64xf32> -> vector<8x64xf32>
    %c0_51 = arith.constant 0 : index
    %c0_52 = arith.constant 0 : index
    %126 = vector.load %arg11[%c0_51, %c0_52] : memref<1x64xf32, #tpu.memory_space<vmem>>, vector<1x64xf32>
    %127 = vector.broadcast %126 : vector<1x64xf32> to vector<8x64xf32>
    %128 = arith.addf %125, %127 : vector<8x64xf32>
    %cst_53 = arith.constant 0.000000e+00 : f32
    %129 = vector.broadcast %cst_53 : f32 to vector<8x64xf32>
    %130 = arith.maximumf %128, %129 : vector<8x64xf32>
    %131 = arith.truncf %130 : vector<8x64xf32> to vector<8x64xbf16>
    %c0_54 = arith.constant 0 : index
    %c0_55 = arith.constant 0 : index
    %132 = vector.load %arg12[%c0_54, %c0_55] : memref<64x32xbf16, #tpu.memory_space<vmem>>, vector<64x32xbf16>
    %cst_56 = arith.constant dense<0.000000e+00> : vector<8x32xf32>
    %133 = tpu.matmul %131, %132, %cst_56 {dimension_numbers = #tpu.dot_dimension_numbers<[1], [0], [0], [1], [0, 0, 1, 1], [], []>} : vector<8x64xbf16>, vector<64x32xbf16>, vector<8x32xf32> -> vector<8x32xf32>
    %c0_57 = arith.constant 0 : index
    %c0_58 = arith.constant 0 : index
    %134 = vector.load %arg13[%c0_57, %c0_58] : memref<1x32xf32, #tpu.memory_space<vmem>>, vector<1x32xf32>
    %135 = vector.broadcast %134 : vector<1x32xf32> to vector<8x32xf32>
    %136 = arith.addf %133, %135 : vector<8x32xf32>
    %137 = arith.addf %122, %136 : vector<8x32xf32>
    %cst_59 = arith.constant dense<0.000000e+00> : vector<8xf32>
    %138 = vector.multi_reduction <add>, %137, %cst_59 [1] : vector<8x32xf32> to vector<8xf32>
    %139 = vector.shape_cast %138 : vector<8xf32> to vector<8x1xf32>
    %cst_60 = arith.constant 3.125000e-02 : f32
    %140 = vector.broadcast %cst_60 : f32 to vector<8x1xf32>
    %141 = arith.mulf %139, %140 : vector<8x1xf32>
    %142 = arith.mulf %137, %137 : vector<8x32xf32>
    %cst_61 = arith.constant dense<0.000000e+00> : vector<8xf32>
    %143 = vector.multi_reduction <add>, %142, %cst_61 [1] : vector<8x32xf32> to vector<8xf32>
    %144 = vector.shape_cast %143 : vector<8xf32> to vector<8x1xf32>
    %cst_62 = arith.constant 3.125000e-02 : f32
    %145 = vector.broadcast %cst_62 : f32 to vector<8x1xf32>
    %146 = arith.mulf %144, %145 : vector<8x1xf32>
    %147 = arith.mulf %141, %141 : vector<8x1xf32>
    %148 = arith.subf %146, %147 : vector<8x1xf32>
    %cst_63 = arith.constant 0.000000e+00 : f32
    %149 = vector.broadcast %cst_63 : f32 to vector<8x1xf32>
    %150 = arith.maximumf %148, %149 : vector<8x1xf32>
    %151 = vector.broadcast %141 : vector<8x1xf32> to vector<8x32xf32>
    %152 = arith.subf %137, %151 : vector<8x32xf32>
    %cst_64 = arith.constant 9.99999974E-6 : f32
    %153 = vector.broadcast %cst_64 : f32 to vector<8x1xf32>
    %154 = arith.addf %150, %153 : vector<8x1xf32>
    %155 = math.rsqrt %154 : vector<8x1xf32>
    %156 = vector.broadcast %155 : vector<8x1xf32> to vector<8x32xf32>
    %157 = arith.mulf %152, %156 : vector<8x32xf32>
    %c0_65 = arith.constant 0 : index
    %c0_66 = arith.constant 0 : index
    %158 = vector.load %arg16[%c0_65, %c0_66] : memref<1x32xf32, #tpu.memory_space<vmem>>, vector<1x32xf32>
    %159 = vector.broadcast %158 : vector<1x32xf32> to vector<8x32xf32>
    %160 = arith.mulf %157, %159 : vector<8x32xf32>
    %c0_67 = arith.constant 0 : index
    %c0_68 = arith.constant 0 : index
    %161 = vector.load %arg17[%c0_67, %c0_68] : memref<1x32xf32, #tpu.memory_space<vmem>>, vector<1x32xf32>
    %162 = vector.broadcast %161 : vector<1x32xf32> to vector<8x32xf32>
    %163 = arith.addf %160, %162 : vector<8x32xf32>
    %c0_69 = arith.constant 0 : index
    %c0_70 = arith.constant 0 : index
    %c0_71 = arith.constant 0 : index
    %164 = vector.load %arg18[%c0_69, %c0_70, %c0_71] : memref<1x8x32xf32, #tpu.memory_space<vmem>>, vector<1x8x32xf32>
    %165 = vector.shape_cast %164 : vector<1x8x32xf32> to vector<8x32xf32>
    %166 = vector.shape_cast %163 : vector<8x32xf32> to vector<1x8x32xf32>
    tpu.vector_store %arg18[%c0_69, %c0_70, %c0_71], %166 {strides = array<i32>} : memref<1x8x32xf32, #tpu.memory_space<vmem>>, vector<1x8x32xf32>,
    return
  }
  func.func @transform_0(%arg0: i32) -> (i32, i32, i32) {
    %c0_i32 = arith.constant 0 : i32
    %c0_i32_0 = arith.constant 0 : i32
    %c0_i32_1 = arith.constant 0 : i32
    return %arg0, %c0_i32, %c0_i32_0 : i32, i32, i32
  }
  func.func @transform_1(%arg0: i32) -> (i32, i32, i32) {
    %c0_i32 = arith.constant 0 : i32
    %c0_i32_0 = arith.constant 0 : i32
    %c0_i32_1 = arith.constant 0 : i32
    return %arg0, %c0_i32, %c0_i32_0 : i32, i32, i32
  }
  func.func @transform_2(%arg0: i32) -> (i32, i32, i32) {
    %c0_i32 = arith.constant 0 : i32
    %c0_i32_0 = arith.constant 0 : i32
    %c0_i32_1 = arith.constant 0 : i32
    return %arg0, %c0_i32, %c0_i32_0 : i32, i32, i32
  }
  func.func @transform_3(%arg0: i32) -> (i32, i32) {
    %c0_i32 = arith.constant 0 : i32
    %c0_i32_0 = arith.constant 0 : i32
    %c0_i32_1 = arith.constant 0 : i32
    return %c0_i32, %c0_i32_0 : i32, i32
  }
  func.func @transform_4(%arg0: i32) -> (i32, i32) {
    %c0_i32 = arith.constant 0 : i32
    %c0_i32_0 = arith.constant 0 : i32
    %c0_i32_1 = arith.constant 0 : i32
    return %c0_i32, %c0_i32_0 : i32, i32
  }
  func.func @transform_5(%arg0: i32) -> (i32, i32) {
    %c0_i32 = arith.constant 0 : i32
    %c0_i32_0 = arith.constant 0 : i32
    %c0_i32_1 = arith.constant 0 : i32
    return %c0_i32, %c0_i32_0 : i32, i32
  }
  func.func @transform_6(%arg0: i32) -> (i32, i32) {
    %c0_i32 = arith.constant 0 : i32
    %c0_i32_0 = arith.constant 0 : i32
    %c0_i32_1 = arith.constant 0 : i32
    return %c0_i32, %c0_i32_0 : i32, i32
  }
  func.func @transform_7(%arg0: i32) -> (i32, i32) {
    %c0_i32 = arith.constant 0 : i32
    %c0_i32_0 = arith.constant 0 : i32
    %c0_i32_1 = arith.constant 0 : i32
    return %c0_i32, %c0_i32_0 : i32, i32
  }
  func.func @transform_8(%arg0: i32) -> (i32, i32) {
    %c0_i32 = arith.constant 0 : i32
    %c0_i32_0 = arith.constant 0 : i32
    %c0_i32_1 = arith.constant 0 : i32
    return %c0_i32, %c0_i32_0 : i32, i32
  }
  func.func @transform_9(%arg0: i32) -> (i32, i32) {
    %c0_i32 = arith.constant 0 : i32
    %c0_i32_0 = arith.constant 0 : i32
    %c0_i32_1 = arith.constant 0 : i32
    return %c0_i32, %c0_i32_0 : i32, i32
  }
  func.func @transform_10(%arg0: i32) -> (i32, i32) {
    %c0_i32 = arith.constant 0 : i32
    %c0_i32_0 = arith.constant 0 : i32
    %c0_i32_1 = arith.constant 0 : i32
    return %c0_i32, %c0_i32_0 : i32, i32
  }
  func.func @transform_11(%arg0: i32) -> (i32, i32) {
    %c0_i32 = arith.constant 0 : i32
    %c0_i32_0 = arith.constant 0 : i32
    %c0_i32_1 = arith.constant 0 : i32
    return %c0_i32, %c0_i32_0 : i32, i32
  }
  func.func @transform_12(%arg0: i32) -> (i32, i32) {
    %c0_i32 = arith.constant 0 : i32
    %c0_i32_0 = arith.constant 0 : i32
    %c0_i32_1 = arith.constant 0 : i32
    return %c0_i32, %c0_i32_0 : i32, i32
  }
  func.func @transform_13(%arg0: i32) -> (i32, i32) {
    %c0_i32 = arith.constant 0 : i32
    %c0_i32_0 = arith.constant 0 : i32
    %c0_i32_1 = arith.constant 0 : i32
    return %c0_i32, %c0_i32_0 : i32, i32
  }
  func.func @transform_14(%arg0: i32) -> (i32, i32) {
    %c0_i32 = arith.constant 0 : i32
    %c0_i32_0 = arith.constant 0 : i32
    %c0_i32_1 = arith.constant 0 : i32
    return %c0_i32, %c0_i32_0 : i32, i32
  }
  func.func @transform_15(%arg0: i32) -> (i32, i32) {
    %c0_i32 = arith.constant 0 : i32
    %c0_i32_0 = arith.constant 0 : i32
    %c0_i32_1 = arith.constant 0 : i32
    return %c0_i32, %c0_i32_0 : i32, i32
  }
  func.func @transform_16(%arg0: i32) -> (i32, i32) {
    %c0_i32 = arith.constant 0 : i32
    %c0_i32_0 = arith.constant 0 : i32
    %c0_i32_1 = arith.constant 0 : i32
    return %c0_i32, %c0_i32_0 : i32, i32
  }
  func.func @transform_17(%arg0: i32) -> (i32, i32, i32) {
    %c0_i32 = arith.constant 0 : i32
    %c0_i32_0 = arith.constant 0 : i32
    %c0_i32_1 = arith.constant 0 : i32
    return %arg0, %c0_i32, %c0_i32_0 : i32, i32, i32
  }
}

</mosaic_0001>

<llo_original>
// kernel: tpu_custom_call.1
$region0: #{tpu_custom_call.1}
  #allocation0 [shape = 'u32[]', space=smem, size = 0x4, offset = 0x4, fixed_abs, tag = 'smem constant byte address 0x4 - core index']
  #allocation1 [shape = 'u32[72,128]{1,0:T(1,128)}', space=vmem, size = 0x9000, scoped, tag = 'internal scratch']
  %s0 = inlined_call_operand.vmem [shape: f32[2,8,32], index: 0, kind: input, shape index: {}]
  %s1 = inlined_call_operand.vmem [shape: f32[2,8,32], index: 1, kind: input, shape index: {}]
  %s2 = inlined_call_operand.vmem [shape: f32[2,8,8], index: 2, kind: input, shape index: {}]
  %s3 = inlined_call_operand.hbm [shape: bf16[32,64], index: 3, kind: input, shape index: {}]
  %s4 = inlined_call_operand.vmem [shape: f32[1,64], index: 4, kind: input, shape index: {}]
  %s5 = inlined_call_operand.hbm [shape: bf16[32,32], index: 5, kind: input, shape index: {}]
  %s6 = inlined_call_operand.vmem [shape: f32[1,32], index: 6, kind: input, shape index: {}]
  %s7 = inlined_call_operand.hbm [shape: bf16[32,32], index: 7, kind: input, shape index: {}]
  %s8 = inlined_call_operand.vmem [shape: f32[1,32], index: 8, kind: input, shape index: {}]
  %s9 = inlined_call_operand.hbm [shape: bf16[32,64], index: 9, kind: input, shape index: {}]
  %s10 = inlined_call_operand.vmem [shape: f32[1,64], index: 10, kind: input, shape index: {}]
  %s11 = inlined_call_operand.vmem [shape: bf16[64,32], index: 11, kind: input, shape index: {}]
  %s12 = inlined_call_operand.vmem [shape: f32[1,32], index: 12, kind: input, shape index: {}]
  %s13 = inlined_call_operand.vmem [shape: f32[1,32], index: 13, kind: input, shape index: {}]
  %s14 = inlined_call_operand.vmem [shape: f32[1,32], index: 14, kind: input, shape index: {}]
  %s15 = inlined_call_operand.vmem [shape: f32[1,32], index: 15, kind: input, shape index: {}]
  %s16 = inlined_call_operand.vmem [shape: f32[1,32], index: 16, kind: input, shape index: {}]
  %s17 = inlined_call_operand.hbm [shape: f32[2,8,32], index: 17, kind: output, shape index: {}]
  %s18 = sld [smem:[#allocation0]]
  $region117: #{tpu_custom_call.1} parent=0
    _
  %s20 = ssub.s32 1, %s18
  %s21 = scalar_select 0, %s20, %s18
  $region1: #{tpu_custom_call.1} parent=0
    #allocation2 [shape = 'u8[8192]{0}', space=vmem, size = 0x2000, scoped, tag = 'input window, operand 3, single buffered']
    #allocation3 [shape = 's32[2]{0}', space=sflag, size = 0x8, scoped, tag = 'scoped memory for tpu_custom_call.1']
    #allocation4 [shape = 's32[2]{0}', space=sflag, size = 0x8, scoped, tag = 'scoped memory for tpu_custom_call.1']
    #allocation5 [shape = 'u8[8192]{0}', space=vmem, size = 0x2000, scoped, tag = 'input window, operand 5, single buffered']
    #allocation6 [shape = 's32[1]{0}', space=sflag, size = 0x4, scoped, tag = 'scoped memory for tpu_custom_call.1']
    #allocation7 [shape = 'u8[8192]{0}', space=vmem, size = 0x2000, scoped, tag = 'input window, operand 7, single buffered']
    #allocation8 [shape = 'u8[8192]{0}', space=vmem, size = 0x2000, scoped, tag = 'input window, operand 9, single buffered']
    #allocation9 [shape = 's32[1]{0}', space=sflag, size = 0x4, scoped, tag = 'scoped memory for tpu_custom_call.1']
    #allocation10 [shape = 'u8[8192]{0}', space=vmem, size = 0x2000, scoped, tag = 'output window, operand 0']
    %22 = vsyncpa [#allocation3], 0
    %23 = vsyncpa [#allocation6], 0
    %24 = vsyncpa [#allocation9], 0
    %25 = vsyncpa [#allocation4], 0
    %s26 = scalar_lea.sflag [#allocation4], 1
    %27 = vsyncpa %s26, 0
    loop: start=0, step=1, limit=4
    $region2: #{tpu_custom_call.1} parent=1 // loop_pre_header
      _
    $region3: #{tpu_custom_call.1} parent=1 // loop_header
      %s29 = sphi 0, %s33
      %p30 = scmp.ge.s32.totalorder %s29, 4
      %s39 = sphi 0, %s41
      %s42 = sphi 0, %s39
      %s43 = sphi 0, %s42
      %s59 = sphi 0, %s43
      %s65 = sphi 0, %s67
      %s68 = sphi 0, %s65
      %s69 = sphi 0, %s68
      %s85 = sphi 0, %s69
      %s91 = sphi 0, %s93
      %s94 = sphi 0, %s91
      %s95 = sphi 0, %s94
      %s111 = sphi 0, %s95
      %s115 = sphi 0, %s115
      %s117 = sphi 0, %s115
      %s118 = sphi 0, %s117
      %s132 = sphi 0, %s118
      %s136 = sphi 0, %s136
      %s138 = sphi 0, %s136
      %s139 = sphi 0, %s138
      %s153 = sphi 0, %s139
      %s157 = sphi 0, %s157
      %s159 = sphi 0, %s157
      %s160 = sphi 0, %s159
      %s174 = sphi 0, %s160
      %s178 = sphi 0, %s178
      %s180 = sphi 0, %s178
      %s181 = sphi 0, %s180
      %s195 = sphi 0, %s181
      %s199 = sphi 0, %s199
      %s201 = sphi 0, %s199
      %s202 = sphi 0, %s201
      %s216 = sphi 0, %s202
      %s220 = sphi 0, %s220
      %s222 = sphi 0, %s220
      %s223 = sphi 0, %s222
      %s237 = sphi 0, %s223
      %s241 = sphi 0, %s241
      %s243 = sphi 0, %s241
      %s244 = sphi 0, %s243
      %s258 = sphi 0, %s244
      %s262 = sphi 0, %s262
      %s264 = sphi 0, %s262
      %s265 = sphi 0, %s264
      %s279 = sphi 0, %s265
      %s283 = sphi 0, %s283
      %s285 = sphi 0, %s283
      %s286 = sphi 0, %s285
      %s300 = sphi 0, %s286
      %s304 = sphi 0, %s304
      %s306 = sphi 0, %s304
      %s307 = sphi 0, %s306
      %s321 = sphi 0, %s307
      %s325 = sphi 0, %s325
      %s327 = sphi 0, %s325
      %s328 = sphi 0, %s327
      %s342 = sphi 0, %s328
      %s346 = sphi 0, %s346
      %s348 = sphi 0, %s346
      %s349 = sphi 0, %s348
      %s363 = sphi 0, %s349
      %s367 = sphi 0, %s367
      %s369 = sphi 0, %s367
      %s370 = sphi 0, %s369
      %s384 = sphi 0, %s370
      %s388 = sphi 0, %s388
      %s390 = sphi 0, %s388
      %s391 = sphi 0, %s390
      %s405 = sphi 0, %s391
      %s411 = sphi 0, %s413
      %s414 = sphi 0, %s411
      %s415 = sphi 0, %s414
      %s431 = sphi 0, %s415
    $region4: #{tpu_custom_call.1} parent=1 // loop_header_branch
      %32 = sbr.rel (%p30) target = $region8
    $region5: #{tpu_custom_call.1} parent=1 // loop_body
      %s34 = ssub.s32 %s29, 1
      %s35 = ssub.s32 %s29, 2
      %s36 = sadd.s32 %s29, 1
      %s37 = ssub.s32 %s29, %s36
      %p38 = scmp.eq.s32.totalorder %s37, 0
      %s40 = sadd.s32 %s39, 1
      %s41 = scalar_select %p38, %s39, %s40
      %p44 = pneg %p38
      %p45 = scmp.eq.s32.totalorder %s29, 1
      %p46 = por %p44, %p45
      %p47 = scmp.ne.s32.totalorder %s39, %s42
      %p48 = scmp.eq.s32.totalorder %s29, 0
      %p49 = por %p47, %p48
      %p50 = scmp.ne.s32.totalorder %s39, %s42
      %p51 = scmp.eq.s32.totalorder %s34, 1
      %p52 = por %p50, %p51
      %p53 = scmp.ne.s32.totalorder %s42, %s43
      %p54 = scmp.eq.s32.totalorder %s34, 0
      %p55 = por %p53, %p54
      %p56 = scmp.ne.s32.totalorder %s42, %s43
      %p57 = scmp.eq.s32.totalorder %s35, 1
      %p58 = por %p56, %p57
      %p60 = scmp.ne.s32.totalorder %s43, %s59
      %p61 = scmp.eq.s32.totalorder %s35, 0
      %p62 = por %p60, %p61
      %s63 = ssub.s32 %s29, %s36
      %p64 = scmp.eq.s32.totalorder %s63, 0
      %s66 = sadd.s32 %s65, 1
      %s67 = scalar_select %p64, %s65, %s66
      %p70 = pneg %p64
      %p71 = scmp.eq.s32.totalorder %s29, 1
      %p72 = por %p70, %p71
      %p73 = scmp.ne.s32.totalorder %s65, %s68
      %p74 = scmp.eq.s32.totalorder %s29, 0
      %p75 = por %p73, %p74
      %p76 = scmp.ne.s32.totalorder %s65, %s68
      %p77 = scmp.eq.s32.totalorder %s34, 1
      %p78 = por %p76, %p77
      %p79 = scmp.ne.s32.totalorder %s68, %s69
      %p80 = scmp.eq.s32.totalorder %s34, 0
      %p81 = por %p79, %p80
      %p82 = scmp.ne.s32.totalorder %s68, %s69
      %p83 = scmp.eq.s32.totalorder %s35, 1
      %p84 = por %p82, %p83
      %p86 = scmp.ne.s32.totalorder %s69, %s85
      %p87 = scmp.eq.s32.totalorder %s35, 0
      %p88 = por %p86, %p87
      %s89 = ssub.s32 %s29, %s36
      %p90 = scmp.eq.s32.totalorder %s89, 0
      %s92 = sadd.s32 %s91, 1
      %s93 = scalar_select %p90, %s91, %s92
      %p96 = pneg %p90
      %p97 = scmp.eq.s32.totalorder %s29, 1
      %p98 = por %p96, %p97
      %p99 = scmp.ne.s32.totalorder %s91, %s94
      %p100 = scmp.eq.s32.totalorder %s29, 0
      %p101 = por %p99, %p100
      %p102 = scmp.ne.s32.totalorder %s91, %s94
      %p103 = scmp.eq.s32.totalorder %s34, 1
      %p104 = por %p102, %p103
      %p105 = scmp.ne.s32.totalorder %s94, %s95
      %p106 = scmp.eq.s32.totalorder %s34, 0
      %p107 = por %p105, %p106
      %p108 = scmp.ne.s32.totalorder %s94, %s95
      %p109 = scmp.eq.s32.totalorder %s35, 1
      %p110 = por %p108, %p109
      %p112 = scmp.ne.s32.totalorder %s95, %s111
      %p113 = scmp.eq.s32.totalorder %s35, 0
      %p114 = por %p112, %p113
      %s116 = sadd.s32 %s115, 1
      %p119 = scmp.eq.s32.totalorder %s29, 1
      %p120 = scmp.ne.s32.totalorder %s115, %s117
      %p121 = scmp.eq.s32.totalorder %s29, 0
      %p122 = por %p120, %p121
      %p123 = scmp.ne.s32.totalorder %s115, %s117
      %p124 = scmp.eq.s32.totalorder %s34, 1
      %p125 = por %p123, %p124
      %p126 = scmp.ne.s32.totalorder %s117, %s118
      %p127 = scmp.eq.s32.totalorder %s34, 0
      %p128 = por %p126, %p127
      %p129 = scmp.ne.s32.totalorder %s117, %s118
      %p130 = scmp.eq.s32.totalorder %s35, 1
      %p131 = por %p129, %p130
      %p133 = scmp.ne.s32.totalorder %s118, %s132
      %p134 = scmp.eq.s32.totalorder %s35, 0
      %p135 = por %p133, %p134
      %s137 = sadd.s32 %s136, 1
      %p140 = scmp.eq.s32.totalorder %s29, 1
      %p141 = scmp.ne.s32.totalorder %s136, %s138
      %p142 = scmp.eq.s32.totalorder %s29, 0
      %p143 = por %p141, %p142
      %p144 = scmp.ne.s32.totalorder %s136, %s138
      %p145 = scmp.eq.s32.totalorder %s34, 1
      %p146 = por %p144, %p145
      %p147 = scmp.ne.s32.totalorder %s138, %s139
      %p148 = scmp.eq.s32.totalorder %s34, 0
      %p149 = por %p147, %p148
      %p150 = scmp.ne.s32.totalorder %s138, %s139
      %p151 = scmp.eq.s32.totalorder %s35, 1
      %p152 = por %p150, %p151
      %p154 = scmp.ne.s32.totalorder %s139, %s153
      %p155 = scmp.eq.s32.totalorder %s35, 0
      %p156 = por %p154, %p155
      %s158 = sadd.s32 %s157, 1
      %p161 = scmp.eq.s32.totalorder %s29, 1
      %p162 = scmp.ne.s32.totalorder %s157, %s159
      %p163 = scmp.eq.s32.totalorder %s29, 0
      %p164 = por %p162, %p163
      %p165 = scmp.ne.s32.totalorder %s157, %s159
      %p166 = scmp.eq.s32.totalorder %s34, 1
      %p167 = por %p165, %p166
      %p168 = scmp.ne.s32.totalorder %s159, %s160
      %p169 = scmp.eq.s32.totalorder %s34, 0
      %p170 = por %p168, %p169
      %p171 = scmp.ne.s32.totalorder %s159, %s160
      %p172 = scmp.eq.s32.totalorder %s35, 1
      %p173 = por %p171, %p172
      %p175 = scmp.ne.s32.totalorder %s160, %s174
      %p176 = scmp.eq.s32.totalorder %s35, 0
      %p177 = por %p175, %p176
      %s179 = sadd.s32 %s178, 1
      %p182 = scmp.eq.s32.totalorder %s29, 1
      %p183 = scmp.ne.s32.totalorder %s178, %s180
      %p184 = scmp.eq.s32.totalorder %s29, 0
      %p185 = por %p183, %p184
      %p186 = scmp.ne.s32.totalorder %s178, %s180
      %p187 = scmp.eq.s32.totalorder %s34, 1
      %p188 = por %p186, %p187
      %p189 = scmp.ne.s32.totalorder %s180, %s181
      %p190 = scmp.eq.s32.totalorder %s34, 0
      %p191 = por %p189, %p190
      %p192 = scmp.ne.s32.totalorder %s180, %s181
      %p193 = scmp.eq.s32.totalorder %s35, 1
      %p194 = por %p192, %p193
      %p196 = scmp.ne.s32.totalorder %s181, %s195
      %p197 = scmp.eq.s32.totalorder %s35, 0
      %p198 = por %p196, %p197
      %s200 = sadd.s32 %s199, 1
      %p203 = scmp.eq.s32.totalorder %s29, 1
      %p204 = scmp.ne.s32.totalorder %s199, %s201
      %p205 = scmp.eq.s32.totalorder %s29, 0
      %p206 = por %p204, %p205
      %p207 = scmp.ne.s32.totalorder %s199, %s201
      %p208 = scmp.eq.s32.totalorder %s34, 1
      %p209 = por %p207, %p208
      %p210 = scmp.ne.s32.totalorder %s201, %s202
      %p211 = scmp.eq.s32.totalorder %s34, 0
      %p212 = por %p210, %p211
      %p213 = scmp.ne.s32.totalorder %s201, %s202
      %p214 = scmp.eq.s32.totalorder %s35, 1
      %p215 = por %p213, %p214
      %p217 = scmp.ne.s32.totalorder %s202, %s216
      %p218 = scmp.eq.s32.totalorder %s35, 0
      %p219 = por %p217, %p218
      %s221 = sadd.s32 %s220, 1
      %p224 = scmp.eq.s32.totalorder %s29, 1
      %p225 = scmp.ne.s32.totalorder %s220, %s222
      %p226 = scmp.eq.s32.totalorder %s29, 0
      %p227 = por %p225, %p226
      %p228 = scmp.ne.s32.totalorder %s220, %s222
      %p229 = scmp.eq.s32.totalorder %s34, 1
      %p230 = por %p228, %p229
      %p231 = scmp.ne.s32.totalorder %s222, %s223
      %p232 = scmp.eq.s32.totalorder %s34, 0
      %p233 = por %p231, %p232
      %p234 = scmp.ne.s32.totalorder %s222, %s223
      %p235 = scmp.eq.s32.totalorder %s35, 1
      %p236 = por %p234, %p235
      %p238 = scmp.ne.s32.totalorder %s223, %s237
      %p239 = scmp.eq.s32.totalorder %s35, 0
      %p240 = por %p238, %p239
      %s242 = sadd.s32 %s241, 1
      %p245 = scmp.eq.s32.totalorder %s29, 1
      %p246 = scmp.ne.s32.totalorder %s241, %s243
      %p247 = scmp.eq.s32.totalorder %s29, 0
      %p248 = por %p246, %p247
      %p249 = scmp.ne.s32.totalorder %s241, %s243
      %p250 = scmp.eq.s32.totalorder %s34, 1
      %p251 = por %p249, %p250
      %p252 = scmp.ne.s32.totalorder %s243, %s244
      %p253 = scmp.eq.s32.totalorder %s34, 0
      %p254 = por %p252, %p253
      %p255 = scmp.ne.s32.totalorder %s243, %s244
      %p256 = scmp.eq.s32.totalorder %s35, 1
      %p257 = por %p255, %p256
      %p259 = scmp.ne.s32.totalorder %s244, %s258
      %p260 = scmp.eq.s32.totalorder %s35, 0
      %p261 = por %p259, %p260
      %s263 = sadd.s32 %s262, 1
      %p266 = scmp.eq.s32.totalorder %s29, 1
      %p267 = scmp.ne.s32.totalorder %s262, %s264
      %p268 = scmp.eq.s32.totalorder %s29, 0
      %p269 = por %p267, %p268
      %p270 = scmp.ne.s32.totalorder %s262, %s264
      %p271 = scmp.eq.s32.totalorder %s34, 1
      %p272 = por %p270, %p271
      %p273 = scmp.ne.s32.totalorder %s264, %s265
      %p274 = scmp.eq.s32.totalorder %s34, 0
      %p275 = por %p273, %p274
      %p276 = scmp.ne.s32.totalorder %s264, %s265
      %p277 = scmp.eq.s32.totalorder %s35, 1
      %p278 = por %p276, %p277
      %p280 = scmp.ne.s32.totalorder %s265, %s279
      %p281 = scmp.eq.s32.totalorder %s35, 0
      %p282 = por %p280, %p281
      %s284 = sadd.s32 %s283, 1
      %p287 = scmp.eq.s32.totalorder %s29, 1
      %p288 = scmp.ne.s32.totalorder %s283, %s285
      %p289 = scmp.eq.s32.totalorder %s29, 0
      %p290 = por %p288, %p289
      %p291 = scmp.ne.s32.totalorder %s283, %s285
      %p292 = scmp.eq.s32.totalorder %s34, 1
      %p293 = por %p291, %p292
      %p294 = scmp.ne.s32.totalorder %s285, %s286
      %p295 = scmp.eq.s32.totalorder %s34, 0
      %p296 = por %p294, %p295
      %p297 = scmp.ne.s32.totalorder %s285, %s286
      %p298 = scmp.eq.s32.totalorder %s35, 1
      %p299 = por %p297, %p298
      %p301 = scmp.ne.s32.totalorder %s286, %s300
      %p302 = scmp.eq.s32.totalorder %s35, 0
      %p303 = por %p301, %p302
      %s305 = sadd.s32 %s304, 1
      %p308 = scmp.eq.s32.totalorder %s29, 1
      %p309 = scmp.ne.s32.totalorder %s304, %s306
      %p310 = scmp.eq.s32.totalorder %s29, 0
      %p311 = por %p309, %p310
      %p312 = scmp.ne.s32.totalorder %s304, %s306
      %p313 = scmp.eq.s32.totalorder %s34, 1
      %p314 = por %p312, %p313
      %p315 = scmp.ne.s32.totalorder %s306, %s307
      %p316 = scmp.eq.s32.totalorder %s34, 0
      %p317 = por %p315, %p316
      %p318 = scmp.ne.s32.totalorder %s306, %s307
      %p319 = scmp.eq.s32.totalorder %s35, 1
      %p320 = por %p318, %p319
      %p322 = scmp.ne.s32.totalorder %s307, %s321
      %p323 = scmp.eq.s32.totalorder %s35, 0
      %p324 = por %p322, %p323
      %s326 = sadd.s32 %s325, 1
      %p329 = scmp.eq.s32.totalorder %s29, 1
      %p330 = scmp.ne.s32.totalorder %s325, %s327
      %p331 = scmp.eq.s32.totalorder %s29, 0
      %p332 = por %p330, %p331
      %p333 = scmp.ne.s32.totalorder %s325, %s327
      %p334 = scmp.eq.s32.totalorder %s34, 1
      %p335 = por %p333, %p334
      %p336 = scmp.ne.s32.totalorder %s327, %s328
      %p337 = scmp.eq.s32.totalorder %s34, 0
      %p338 = por %p336, %p337
      %p339 = scmp.ne.s32.totalorder %s327, %s328
      %p340 = scmp.eq.s32.totalorder %s35, 1
      %p341 = por %p339, %p340
      %p343 = scmp.ne.s32.totalorder %s328, %s342
      %p344 = scmp.eq.s32.totalorder %s35, 0
      %p345 = por %p343, %p344
      %s347 = sadd.s32 %s346, 1
      %p350 = scmp.eq.s32.totalorder %s29, 1
      %p351 = scmp.ne.s32.totalorder %s346, %s348
      %p352 = scmp.eq.s32.totalorder %s29, 0
      %p353 = por %p351, %p352
      %p354 = scmp.ne.s32.totalorder %s346, %s348
      %p355 = scmp.eq.s32.totalorder %s34, 1
      %p356 = por %p354, %p355
      %p357 = scmp.ne.s32.totalorder %s348, %s349
      %p358 = scmp.eq.s32.totalorder %s34, 0
      %p359 = por %p357, %p358
      %p360 = scmp.ne.s32.totalorder %s348, %s349
      %p361 = scmp.eq.s32.totalorder %s35, 1
      %p362 = por %p360, %p361
      %p364 = scmp.ne.s32.totalorder %s349, %s363
      %p365 = scmp.eq.s32.totalorder %s35, 0
      %p366 = por %p364, %p365
      %s368 = sadd.s32 %s367, 1
      %p371 = scmp.eq.s32.totalorder %s29, 1
      %p372 = scmp.ne.s32.totalorder %s367, %s369
      %p373 = scmp.eq.s32.totalorder %s29, 0
      %p374 = por %p372, %p373
      %p375 = scmp.ne.s32.totalorder %s367, %s369
      %p376 = scmp.eq.s32.totalorder %s34, 1
      %p377 = por %p375, %p376
      %p378 = scmp.ne.s32.totalorder %s369, %s370
      %p379 = scmp.eq.s32.totalorder %s34, 0
      %p380 = por %p378, %p379
      %p381 = scmp.ne.s32.totalorder %s369, %s370
      %p382 = scmp.eq.s32.totalorder %s35, 1
      %p383 = por %p381, %p382
      %p385 = scmp.ne.s32.totalorder %s370, %s384
      %p386 = scmp.eq.s32.totalorder %s35, 0
      %p387 = por %p385, %p386
      %s389 = sadd.s32 %s388, 1
      %p392 = scmp.eq.s32.totalorder %s29, 1
      %p393 = scmp.ne.s32.totalorder %s388, %s390
      %p394 = scmp.eq.s32.totalorder %s29, 0
      %p395 = por %p393, %p394
      %p396 = scmp.ne.s32.totalorder %s388, %s390
      %p397 = scmp.eq.s32.totalorder %s34, 1
      %p398 = por %p396, %p397
      %p399 = scmp.ne.s32.totalorder %s390, %s391
      %p400 = scmp.eq.s32.totalorder %s34, 0
      %p401 = por %p399, %p400
      %p402 = scmp.ne.s32.totalorder %s390, %s391
      %p403 = scmp.eq.s32.totalorder %s35, 1
      %p404 = por %p402, %p403
      %p406 = scmp.ne.s32.totalorder %s391, %s405
      %p407 = scmp.eq.s32.totalorder %s35, 0
      %p408 = por %p406, %p407
      %s409 = ssub.s32 %s29, %s36
      %p410 = scmp.eq.s32.totalorder %s409, 0
      %s412 = sadd.s32 %s411, 1
      %s413 = scalar_select %p410, %s411, %s412
      %p416 = pneg %p410
      %p417 = scmp.eq.s32.totalorder %s29, 1
      %p418 = por %p416, %p417
      %p419 = scmp.ne.s32.totalorder %s411, %s414
      %p420 = scmp.eq.s32.totalorder %s29, 0
      %p421 = por %p419, %p420
      %p422 = scmp.ne.s32.totalorder %s411, %s414
      %p423 = scmp.eq.s32.totalorder %s34, 1
      %p424 = por %p422, %p423
      %p425 = scmp.ne.s32.totalorder %s414, %s415
      %p426 = scmp.eq.s32.totalorder %s34, 0
      %p427 = por %p425, %p426
      %p428 = scmp.ne.s32.totalorder %s414, %s415
      %p429 = scmp.eq.s32.totalorder %s35, 1
      %p430 = por %p428, %p429
      %p432 = scmp.ne.s32.totalorder %s415, %s431
      %p433 = scmp.eq.s32.totalorder %s35, 0
      %p434 = por %p432, %p433
      %p435 = scmp.le.s32.totalorder 1, %s29
      %p436 = scmp.lt.s32.totalorder %s29, 3
      %p437 = pnand %p435, %p436
      %p438 = pneg %p437
      // Predicated region
      $region9: #{tpu_custom_call.1} parent=5 // pred_check
        _
      $region10: #{tpu_custom_call.1} parent=5 // pred_check_branch
        %440 = sbr.rel (%p437) target = $region12
      $region11: #{tpu_custom_call.1} parent=5 // pred_region
        %s441 = ssub.s32 %s29, 1
        // Predicated region
        $region13: #{tpu_custom_call.1} parent=11 // pred_check
          %p442 = pneg %p128
        $region14: #{tpu_custom_call.1} parent=11 // pred_check_branch
          %444 = sbr.rel (%p442) target = $region16
        $region15: #{tpu_custom_call.1} parent=11 // pred_region
          %446 = vsyncadd [#allocation3], 0
          %s447 = sshll.u32 %s3, 4
          %s448 = int_to_ptr.hbm [resolvable:$true] %s447
          %s449 = sshll.u32 [#allocation2], 4
          %s450 = int_to_ptr.vmem [resolvable:$true] %s449
          %455 = dma.hbm_to_vmem [thread:$0]  %s448, 256, %s450, [#allocation3], 64, 64, 4
        $region16: #{tpu_custom_call.1} parent=11 // pred_fallthru
          _
        // Predicated region
        $region17: #{tpu_custom_call.1} parent=11 // pred_check
          %p456 = pneg %p149
        $region18: #{tpu_custom_call.1} parent=11 // pred_check_branch
          %458 = sbr.rel (%p456) target = $region20
        $region19: #{tpu_custom_call.1} parent=11 // pred_region
          _
        $region20: #{tpu_custom_call.1} parent=11 // pred_fallthru
          _
        // Predicated region
        $region21: #{tpu_custom_call.1} parent=11 // pred_check
          %p459 = pneg %p170
        $region22: #{tpu_custom_call.1} parent=11 // pred_check_branch
          %461 = sbr.rel (%p459) target = $region24
        $region23: #{tpu_custom_call.1} parent=11 // pred_region
          %463 = vsyncadd [#allocation6], 0
          %s464 = sshll.u32 %s5, 4
          %s465 = int_to_ptr.hbm [resolvable:$true] %s464
          %s466 = sshll.u32 [#allocation5], 4
          %s467 = int_to_ptr.vmem [resolvable:$true] %s466
          %472 = dma.hbm_to_vmem [thread:$0]  %s465, 256, %s467, [#allocation6], 64, 64, 4
        $region24: #{tpu_custom_call.1} parent=11 // pred_fallthru
          _
        // Predicated region
        $region25: #{tpu_custom_call.1} parent=11 // pred_check
          %p473 = pneg %p191
        $region26: #{tpu_custom_call.1} parent=11 // pred_check_branch
          %475 = sbr.rel (%p473) target = $region28
        $region27: #{tpu_custom_call.1} parent=11 // pred_region
          _
        $region28: #{tpu_custom_call.1} parent=11 // pred_fallthru
          _
        // Predicated region
        $region29: #{tpu_custom_call.1} parent=11 // pred_check
          %p476 = pneg %p212
        $region30: #{tpu_custom_call.1} parent=11 // pred_check_branch
          %478 = sbr.rel (%p476) target = $region32
        $region31: #{tpu_custom_call.1} parent=11 // pred_region
          %480 = vsyncadd [#allocation6], 0
          %s481 = sshll.u32 %s7, 4
          %s482 = int_to_ptr.hbm [resolvable:$true] %s481
          %s483 = sshll.u32 [#allocation7], 4
          %s484 = int_to_ptr.vmem [resolvable:$true] %s483
          %489 = dma.hbm_to_vmem [thread:$0]  %s482, 256, %s484, [#allocation6], 64, 64, 4
        $region32: #{tpu_custom_call.1} parent=11 // pred_fallthru
          _
        // Predicated region
        $region33: #{tpu_custom_call.1} parent=11 // pred_check
          %p490 = pneg %p233
        $region34: #{tpu_custom_call.1} parent=11 // pred_check_branch
          %492 = sbr.rel (%p490) target = $region36
        $region35: #{tpu_custom_call.1} parent=11 // pred_region
          _
        $region36: #{tpu_custom_call.1} parent=11 // pred_fallthru
          _
        // Predicated region
        $region37: #{tpu_custom_call.1} parent=11 // pred_check
          %p493 = pneg %p254
        $region38: #{tpu_custom_call.1} parent=11 // pred_check_branch
          %495 = sbr.rel (%p493) target = $region40
        $region39: #{tpu_custom_call.1} parent=11 // pred_region
          %497 = vsyncadd [#allocation9], 0
          %s498 = sshll.u32 %s9, 4
          %s499 = int_to_ptr.hbm [resolvable:$true] %s498
          %s500 = sshll.u32 [#allocation8], 4
          %s501 = int_to_ptr.vmem [resolvable:$true] %s500
          %506 = dma.hbm_to_vmem [thread:$0]  %s499, 256, %s501, [#allocation9], 64, 64, 4
        $region40: #{tpu_custom_call.1} parent=11 // pred_fallthru
          _
        // Predicated region
        $region41: #{tpu_custom_call.1} parent=11 // pred_check
          %p507 = pneg %p275
        $region42: #{tpu_custom_call.1} parent=11 // pred_check_branch
          %509 = sbr.rel (%p507) target = $region44
        $region43: #{tpu_custom_call.1} parent=11 // pred_region
          _
        $region44: #{tpu_custom_call.1} parent=11 // pred_fallthru
          _
        // Predicated region
        $region45: #{tpu_custom_call.1} parent=11 // pred_check
          %p510 = pneg %p296
        $region46: #{tpu_custom_call.1} parent=11 // pred_check_branch
          %512 = sbr.rel (%p510) target = $region48
        $region47: #{tpu_custom_call.1} parent=11 // pred_region
          _
        $region48: #{tpu_custom_call.1} parent=11 // pred_fallthru
          _
        // Predicated region
        $region49: #{tpu_custom_call.1} parent=11 // pred_check
          %p513 = pneg %p317
        $region50: #{tpu_custom_call.1} parent=11 // pred_check_branch
          %515 = sbr.rel (%p513) target = $region52
        $region51: #{tpu_custom_call.1} parent=11 // pred_region
          _
        $region52: #{tpu_custom_call.1} parent=11 // pred_fallthru
          _
        // Predicated region
        $region53: #{tpu_custom_call.1} parent=11 // pred_check
          %p516 = pneg %p338
        $region54: #{tpu_custom_call.1} parent=11 // pred_check_branch
          %518 = sbr.rel (%p516) target = $region56
        $region55: #{tpu_custom_call.1} parent=11 // pred_region
          _
        $region56: #{tpu_custom_call.1} parent=11 // pred_fallthru
          _
        // Predicated region
        $region57: #{tpu_custom_call.1} parent=11 // pred_check
          %p519 = pneg %p359
        $region58: #{tpu_custom_call.1} parent=11 // pred_check_branch
          %521 = sbr.rel (%p519) target = $region60
        $region59: #{tpu_custom_call.1} parent=11 // pred_region
          _
        $region60: #{tpu_custom_call.1} parent=11 // pred_fallthru
          _
        // Predicated region
        $region61: #{tpu_custom_call.1} parent=11 // pred_check
          %p522 = pneg %p380
        $region62: #{tpu_custom_call.1} parent=11 // pred_check_branch
          %524 = sbr.rel (%p522) target = $region64
        $region63: #{tpu_custom_call.1} parent=11 // pred_region
          _
        $region64: #{tpu_custom_call.1} parent=11 // pred_fallthru
          _
        // Predicated region
        $region65: #{tpu_custom_call.1} parent=11 // pred_check
          %p525 = pneg %p401
        $region66: #{tpu_custom_call.1} parent=11 // pred_check_branch
          %527 = sbr.rel (%p525) target = $region68
        $region67: #{tpu_custom_call.1} parent=11 // pred_region
          _
        $region68: #{tpu_custom_call.1} parent=11 // pred_fallthru
          _
      $region12: #{tpu_custom_call.1} parent=5 // pred_fallthru
        _
      %p528 = scmp.lt.s32.totalorder %s29, 2
      // Predicated region
      $region69: #{tpu_custom_call.1} parent=5 // pred_check
        %p529 = pneg %p528
      $region70: #{tpu_custom_call.1} parent=5 // pred_check_branch
        %531 = sbr.rel (%p529) target = $region72
      $region71: #{tpu_custom_call.1} parent=5 // pred_region
        // Predicated region
        $region73: #{tpu_custom_call.1} parent=71 // pred_check
          %p532 = pneg %p49
        $region74: #{tpu_custom_call.1} parent=71 // pred_check_branch
          %534 = sbr.rel (%p532) target = $region76
        $region75: #{tpu_custom_call.1} parent=71 // pred_region
          %p535 = scmp.lt.s32.totalorder %s29, 1
          %s536 = scalar_select %p535, %s29, 1
          %s537 = smul.addr %s536, 8
          %s538 = scalar_lea.vmem %s0, %s537
        $region76: #{tpu_custom_call.1} parent=71 // pred_fallthru
          _
        // Predicated region
        $region77: #{tpu_custom_call.1} parent=71 // pred_check
          %p539 = pneg %p75
        $region78: #{tpu_custom_call.1} parent=71 // pred_check_branch
          %541 = sbr.rel (%p539) target = $region80
        $region79: #{tpu_custom_call.1} parent=71 // pred_region
          %p542 = scmp.lt.s32.totalorder %s29, 1
          %s543 = scalar_select %p542, %s29, 1
          %s544 = smul.addr %s543, 8
          %s545 = scalar_lea.vmem %s1, %s544
        $region80: #{tpu_custom_call.1} parent=71 // pred_fallthru
          _
        // Predicated region
        $region81: #{tpu_custom_call.1} parent=71 // pred_check
          %p546 = pneg %p101
        $region82: #{tpu_custom_call.1} parent=71 // pred_check_branch
          %548 = sbr.rel (%p546) target = $region84
        $region83: #{tpu_custom_call.1} parent=71 // pred_region
          %p549 = scmp.lt.s32.totalorder %s29, 1
          %s550 = scalar_select %p549, %s29, 1
          %s551 = smul.addr %s550, 8
          %s552 = scalar_lea.vmem %s2, %s551
        $region84: #{tpu_custom_call.1} parent=71 // pred_fallthru
          _
      $region72: #{tpu_custom_call.1} parent=5 // pred_fallthru
        _
      %p553 = scmp.le.s32.totalorder 1, %s29
      %p554 = scmp.lt.s32.totalorder %s29, 3
      %p555 = pnand %p553, %p554
      %p556 = pneg %p555
      // Predicated region
      $region85: #{tpu_custom_call.1} parent=5 // pred_check
        _
      $region86: #{tpu_custom_call.1} parent=5 // pred_check_branch
        %558 = sbr.rel (%p555) target = $region88
      $region87: #{tpu_custom_call.1} parent=5 // pred_region
        %s559 = ssub.s32 %s29, 1
        // Predicated region
        $region89: #{tpu_custom_call.1} parent=87 // pred_check
          %p560 = pneg %p128
        $region90: #{tpu_custom_call.1} parent=87 // pred_check_branch
          %562 = sbr.rel (%p560) target = $region92
        $region91: #{tpu_custom_call.1} parent=87 // pred_region
          %564 = dma.done [#allocation3], 256
        $region92: #{tpu_custom_call.1} parent=87 // pred_fallthru
          _
        // Predicated region
        $region93: #{tpu_custom_call.1} parent=87 // pred_check
          %p565 = pneg %p170
        $region94: #{tpu_custom_call.1} parent=87 // pred_check_branch
          %567 = sbr.rel (%p565) target = $region96
        $region95: #{tpu_custom_call.1} parent=87 // pred_region
          %569 = dma.done [#allocation6], 256
        $region96: #{tpu_custom_call.1} parent=87 // pred_fallthru
          _
        // Predicated region
        $region97: #{tpu_custom_call.1} parent=87 // pred_check
          %p570 = pneg %p212
        $region98: #{tpu_custom_call.1} parent=87 // pred_check_branch
          %572 = sbr.rel (%p570) target = $region100
        $region99: #{tpu_custom_call.1} parent=87 // pred_region
          %574 = dma.done [#allocation6], 256
        $region100: #{tpu_custom_call.1} parent=87 // pred_fallthru
          _
        // Predicated region
        $region101: #{tpu_custom_call.1} parent=87 // pred_check
          %p575 = pneg %p254
        $region102: #{tpu_custom_call.1} parent=87 // pred_check_branch
          %577 = sbr.rel (%p575) target = $region104
        $region103: #{tpu_custom_call.1} parent=87 // pred_region
          %579 = dma.done [#allocation9], 256
        $region104: #{tpu_custom_call.1} parent=87 // pred_fallthru
          _
        %p580 = scmp.lt.s32.totalorder %s34, 1
        %s581 = scalar_select %p580, %s34, 1
        %s582 = smul.addr %s581, 8
        %s583 = scalar_lea.vmem %s0, %s582
        %p584 = pneg %p55
        %p585 = pneg %p52
        %p586 = scmp.lt.s32.totalorder %s34, 1
        %s587 = scalar_select %p586, %s34, 1
        %s588 = smul.addr %s587, 8
        %s589 = scalar_lea.vmem %s1, %s588
        %p590 = pneg %p81
        %p591 = pneg %p78
        %p592 = scmp.lt.s32.totalorder %s34, 1
        %s593 = scalar_select %p592, %s34, 1
        %s594 = smul.addr %s593, 8
        %s595 = scalar_lea.vmem %s2, %s594
        %p596 = pneg %p107
        %p597 = pneg %p104
        %p598 = pneg %p128
        %p599 = pneg %p125
        %p600 = pneg %p149
        %p601 = pneg %p146
        %p602 = pneg %p170
        %p603 = pneg %p167
        %p604 = pneg %p191
        %p605 = pneg %p188
        %p606 = pneg %p212
        %p607 = pneg %p209
        %p608 = pneg %p233
        %p609 = pneg %p230
        %p610 = pneg %p254
        %p611 = pneg %p251
        %p612 = pneg %p275
        %p613 = pneg %p272
        %p614 = pneg %p296
        %p615 = pneg %p293
        %p616 = pneg %p317
        %p617 = pneg %p314
        %p618 = pneg %p338
        %p619 = pneg %p335
        %p620 = pneg %p359
        %p621 = pneg %p356
        %p622 = pneg %p380
        %p623 = pneg %p377
        %p624 = pneg %p401
        %p625 = pneg %p398
        %p626 = pneg %p427
        %p627 = pneg %p424
        %s628 = sand.u32 %s414, 1
        %s629 = scalar_lea.sflag [#allocation4], %s628
        %s630 = sand.u32 %s414, 1
        %s631 = smul.addr %s630, 8
        %s632 = scalar_lea.vmem [#allocation10], %s631
        %p633 = scmp.lt.s32.totalorder %s34, 1
        %s634 = scalar_select %p633, %s34, 1
        %s635 = smul.addr %s634, 8
        %s636 = scalar_lea.vmem %s0, %s635
        %p637 = scmp.lt.s32.totalorder %s34, 1
        %s638 = scalar_select %p637, %s34, 1
        %s639 = smul.addr %s638, 8
        %s640 = scalar_lea.vmem %s1, %s639
        %p641 = scmp.lt.s32.totalorder %s34, 1
        %s642 = scalar_select %p641, %s34, 1
        %s643 = smul.addr %s642, 8
        %s644 = scalar_lea.vmem %s2, %s643
        %v646 = vld [vmem:[%s636] sm:$0xff]
        %v647 = vld [vmem:[%s640] sm:$0xff]
        %v648 = vld [vmem:[%s644] sm:$0xff]
        %v649 = vadd.f32 %v646, %v647
        %v650 = vpack.c.bf16 %v649, %v649
        %v651 = vld [vmem:[#allocation2] sm:$0xf]
        %v652 = vld [vmem:[#allocation2 + $0x4] sm:$0xf]
        %v653 = vld [vmem:[#allocation2 + $0x8] sm:$0xf]
        %v654 = vld [vmem:[#allocation2 + $0xc] sm:$0xf]
        %v655 = vld [vmem:[%s4] sm:$0x1]
        %v657 = vperm.slane %v655, 0
        %v663 = vunpack.c.l.b16 %v651
        %v664 = vunpack.c.l.b16 %v652
        %v665 = vunpack.c.l.b16 %v653
        %v666 = vunpack.c.l.b16 %v654
        %v667 = vpack.c.b16 %v664, %v663
        %v668 = vpack.c.b16 %v666, %v665
        %vm671 = vcmask 261120
        %v673 = vsel %vm671, %v650, 0
        %675 = vmatpush.bf16.msra.mxu0 0
        %676 = vmatpush.bf16.msra.mxu0 0
        %677 = vmatpush.bf16.msra.mxu0 0
        %678 = vmatpush.bf16.msra.mxu0 0
        %679 = vmatpush.bf16.msra.mxu0 0
        %680 = vmatpush.bf16.msra.mxu0 0
        %681 = vmatpush.bf16.msra.mxu0 %v668
        %682 = vmatpush.bf16.msra.mxu0 %v667
        %683 = vmatmul.bf16.gmra.mxu0 %v673
        %v684 = vpop.f32.mrf.mxu0
        %v685 = vadd.f32 %v657, %v684
        %v686 = vpop.f32.mrf.mxu0
        %687 = vdwg.mxu0
        %v688 = vpack.c.bf16 %v646, %v646
        %v689 = vld [vmem:[#allocation5] sm:$0xf]
        %v690 = vld [vmem:[#allocation5 + $0x4] sm:$0xf]
        %v691 = vld [vmem:[#allocation5 + $0x8] sm:$0xf]
        %v692 = vld [vmem:[#allocation5 + $0xc] sm:$0xf]
        %v693 = vld [vmem:[%s6] sm:$0x1]
        %v695 = vperm.slane %v693, 0
        %v701 = vunpack.c.l.b16 %v689
        %v702 = vunpack.c.l.b16 %v690
        %v703 = vunpack.c.l.b16 %v691
        %v704 = vunpack.c.l.b16 %v692
        %v705 = vpack.c.b16 %v702, %v701
        %v706 = vpack.c.b16 %v704, %v703
        %v710 = vsel %vm671, %v688, 0
        %712 = vmatpush.bf16.msra.mxu0 0
        %713 = vmatpush.bf16.msra.mxu0 0
        %714 = vmatpush.bf16.msra.mxu0 0
        %715 = vmatpush.bf16.msra.mxu0 0
        %716 = vmatpush.bf16.msra.mxu0 0
        %717 = vmatpush.bf16.msra.mxu0 0
        %718 = vmatpush.bf16.msra.mxu0 %v706
        %719 = vmatpush.bf16.msra.mxu0 %v705
        %720 = vmatmul.bf16.gmra.mxu0 %v710
        %v721 = vpop.f32.mrf.mxu0
        %v722 = vadd.f32 %v695, %v721
        %v723 = vpop.f32.mrf.mxu0
        %724 = vdwg.mxu0
        %v725 = vpack.c.bf16 %v685, %v685
        %v726 = vpack.c.bf16 %v722, %v722
        %v728 = vunpack.c.l.b16 %v725
        %v729 = vpack.c.b16 %v728, %v728
        %730 = vrot.lane.b32.xlu0 %v729, 96
        %v731 = vpop.permute.xlu0 %730
        %vm732 = vcmask 64512
        %v734 = vsel %vm732, %v725, 0
        %v737 = vsel %vm732, %v731, 0
        %739 = vmatpush.bf16.xpose.msra.mxu0 0
        %740 = vmatpush.bf16.xpose.msra.mxu0 0
        %741 = vmatpush.bf16.xpose.msra.mxu0 0
        %742 = vmatpush.bf16.xpose.msra.mxu0 0
        %743 = vmatpush.bf16.xpose.msra.mxu0 0
        %744 = vmatpush.bf16.xpose.msra.mxu0 0
        %745 = vmatpush.bf16.xpose.msra.mxu0 0
        %746 = vmatpush.bf16.xpose.msra.mxu0 %v737
        %747 = vmatmul.bf16.gmra.mxu0 %v734
        %v748 = vpop.f32.mrf.mxu0
        %v749 = vadd.f32 %v648, %v748
        %v750 = vpop.f32.mrf.mxu0
        %751 = vdwg.mxu0
        %v752 = vsel %vm732, %v749, -inf
        %753 = vmax.xlane.f32.xlu0 %v752
        %v754 = vpop.xlane.xlu0 %753
        %v755 = vsub.f32 %v749, %v754
        %v756 = vmul.f32 %v755, 1.442695
        %v757 = vpow.pop %v756
        %v758 = vsel %vm732, %v757, 0.0
        %759 = vadd.xlane.f32.xlu0 %v758
        %v760 = vpop.xlane.xlu0 %759
        %v761 = vrcp.pop %v760
        %v762 = vmul.f32 %v757, %v761
        %v763 = vpack.c.bf16 %v762, %v762
        %v765 = vsel %vm732, %v763, 0
        %vm767 = vcmask 1043456
        %v769 = vsel %vm767, %v726, 0
        %771 = vmatpush.bf16.msra.mxu0 0
        %772 = vmatpush.bf16.msra.mxu0 0
        %773 = vmatpush.bf16.msra.mxu0 0
        %774 = vmatpush.bf16.msra.mxu0 0
        %775 = vmatpush.bf16.msra.mxu0 0
        %776 = vmatpush.bf16.msra.mxu0 0
        %777 = vmatpush.bf16.msra.mxu0 0
        %778 = vmatpush.bf16.msra.mxu0 %v769
        %779 = vmatmul.bf16.gmra.mxu0 %v765
        %v780 = vpop.f32.mrf.mxu0
        %v781 = vadd.f32 0.0, %v780
        %v782 = vpop.f32.mrf.mxu0
        %783 = vdwg.mxu0
        %784 = vrot.lane.b32.xlu0 %v729, 120
        %v785 = vpop.permute.xlu0 %784
        %786 = vrot.lane.b32.xlu0 %v729, 88
        %v787 = vpop.permute.xlu0 %786
        %v789 = vsel %vm732, %v785, 0
        %v792 = vsel %vm732, %v787, 0
        %794 = vmatpush.bf16.xpose.msra.mxu0 0
        %795 = vmatpush.bf16.xpose.msra.mxu0 0
        %796 = vmatpush.bf16.xpose.msra.mxu0 0
        %797 = vmatpush.bf16.xpose.msra.mxu0 0
        %798 = vmatpush.bf16.xpose.msra.mxu0 0
        %799 = vmatpush.bf16.xpose.msra.mxu0 0
        %800 = vmatpush.bf16.xpose.msra.mxu0 0
        %801 = vmatpush.bf16.xpose.msra.mxu0 %v792
        %802 = vmatmul.bf16.gmra.mxu0 %v789
        %v803 = vpop.f32.mrf.mxu0
        %v804 = vadd.f32 %v648, %v803
        %v805 = vpop.f32.mrf.mxu0
        %806 = vdwg.mxu0
        %v807 = vsel %vm732, %v804, -inf
        %808 = vmax.xlane.f32.xlu0 %v807
        %v809 = vpop.xlane.xlu0 %808
        %v810 = vsub.f32 %v804, %v809
        %v811 = vmul.f32 %v810, 1.442695
        %v812 = vpow.pop %v811
        %v813 = vsel %vm732, %v812, 0.0
        %814 = vadd.xlane.f32.xlu0 %v813
        %v815 = vpop.xlane.xlu0 %814
        %v816 = vrcp.pop %v815
        %v817 = vmul.f32 %v812, %v816
        %v818 = vpack.c.bf16 %v817, %v817
        %v820 = vunpack.c.l.b16 %v726
        %v821 = vpack.c.b16 %v820, %v820
        %822 = vrot.lane.b32.xlu0 %v821, 120
        %v823 = vpop.permute.xlu0 %822
        %v825 = vsel %vm732, %v818, 0
        %v828 = vsel %vm767, %v823, 0
        %830 = vmatpush.bf16.msra.mxu0 0
        %831 = vmatpush.bf16.msra.mxu0 0
        %832 = vmatpush.bf16.msra.mxu0 0
        %833 = vmatpush.bf16.msra.mxu0 0
        %834 = vmatpush.bf16.msra.mxu0 0
        %835 = vmatpush.bf16.msra.mxu0 0
        %836 = vmatpush.bf16.msra.mxu0 0
        %837 = vmatpush.bf16.msra.mxu0 %v828
        %838 = vmatmul.bf16.gmra.mxu0 %v825
        %v839 = vpop.f32.mrf.mxu0
        %v840 = vadd.f32 0.0, %v839
        %v841 = vpop.f32.mrf.mxu0
        %842 = vdwg.mxu0
        %843 = vrot.lane.b32.xlu0 %v729, 112
        %v844 = vpop.permute.xlu0 %843
        %845 = vrot.lane.b32.xlu0 %v729, 80
        %v846 = vpop.permute.xlu0 %845
        %v848 = vsel %vm732, %v844, 0
        %v851 = vsel %vm732, %v846, 0
        %853 = vmatpush.bf16.xpose.msra.mxu0 0
        %854 = vmatpush.bf16.xpose.msra.mxu0 0
        %855 = vmatpush.bf16.xpose.msra.mxu0 0
        %856 = vmatpush.bf16.xpose.msra.mxu0 0
        %857 = vmatpush.bf16.xpose.msra.mxu0 0
        %858 = vmatpush.bf16.xpose.msra.mxu0 0
        %859 = vmatpush.bf16.xpose.msra.mxu0 0
        %860 = vmatpush.bf16.xpose.msra.mxu0 %v851
        %861 = vmatmul.bf16.gmra.mxu0 %v848
        %v862 = vpop.f32.mrf.mxu0
        %v863 = vadd.f32 %v648, %v862
        %v864 = vpop.f32.mrf.mxu0
        %865 = vdwg.mxu0
        %v866 = vsel %vm732, %v863, -inf
        %867 = vmax.xlane.f32.xlu0 %v866
        %v868 = vpop.xlane.xlu0 %867
        %v869 = vsub.f32 %v863, %v868
        %v870 = vmul.f32 %v869, 1.442695
        %v871 = vpow.pop %v870
        %v872 = vsel %vm732, %v871, 0.0
        %873 = vadd.xlane.f32.xlu0 %v872
        %v874 = vpop.xlane.xlu0 %873
        %v875 = vrcp.pop %v874
        %v876 = vmul.f32 %v871, %v875
        %v877 = vpack.c.bf16 %v876, %v876
        %878 = vrot.lane.b32.xlu0 %v821, 112
        %v879 = vpop.permute.xlu0 %878
        %v881 = vsel %vm732, %v877, 0
        %v884 = vsel %vm767, %v879, 0
        %886 = vmatpush.bf16.msra.mxu0 0
        %887 = vmatpush.bf16.msra.mxu0 0
        %888 = vmatpush.bf16.msra.mxu0 0
        %889 = vmatpush.bf16.msra.mxu0 0
        %890 = vmatpush.bf16.msra.mxu0 0
        %891 = vmatpush.bf16.msra.mxu0 0
        %892 = vmatpush.bf16.msra.mxu0 0
        %893 = vmatpush.bf16.msra.mxu0 %v884
        %894 = vmatmul.bf16.gmra.mxu0 %v881
        %v895 = vpop.f32.mrf.mxu0
        %v896 = vadd.f32 0.0, %v895
        %v897 = vpop.f32.mrf.mxu0
        %898 = vdwg.mxu0
        %899 = vrot.lane.b32.xlu0 %v729, 104
        %v900 = vpop.permute.xlu0 %899
        %901 = vrot.lane.b32.xlu0 %v729, 72
        %v902 = vpop.permute.xlu0 %901
        %v904 = vsel %vm732, %v900, 0
        %v907 = vsel %vm732, %v902, 0
        %909 = vmatpush.bf16.xpose.msra.mxu0 0
        %910 = vmatpush.bf16.xpose.msra.mxu0 0
        %911 = vmatpush.bf16.xpose.msra.mxu0 0
        %912 = vmatpush.bf16.xpose.msra.mxu0 0
        %913 = vmatpush.bf16.xpose.msra.mxu0 0
        %914 = vmatpush.bf16.xpose.msra.mxu0 0
        %915 = vmatpush.bf16.xpose.msra.mxu0 0
        %916 = vmatpush.bf16.xpose.msra.mxu0 %v907
        %917 = vmatmul.bf16.gmra.mxu0 %v904
        %v918 = vpop.f32.mrf.mxu0
        %v919 = vadd.f32 %v648, %v918
        %v920 = vpop.f32.mrf.mxu0
        %921 = vdwg.mxu0
        %v922 = vsel %vm732, %v919, -inf
        %923 = vmax.xlane.f32.xlu0 %v922
        %v924 = vpop.xlane.xlu0 %923
        %v925 = vsub.f32 %v919, %v924
        %v926 = vmul.f32 %v925, 1.442695
        %v927 = vpow.pop %v926
        %v928 = vsel %vm732, %v927, 0.0
        %929 = vadd.xlane.f32.xlu0 %v928
        %v930 = vpop.xlane.xlu0 %929
        %v931 = vrcp.pop %v930
        %v932 = vmul.f32 %v927, %v931
        %v933 = vpack.c.bf16 %v932, %v932
        %934 = vrot.lane.b32.xlu0 %v821, 104
        %v935 = vpop.permute.xlu0 %934
        %v937 = vsel %vm732, %v933, 0
        %v940 = vsel %vm767, %v935, 0
        %942 = vmatpush.bf16.msra.mxu0 0
        %943 = vmatpush.bf16.msra.mxu0 0
        %944 = vmatpush.bf16.msra.mxu0 0
        %945 = vmatpush.bf16.msra.mxu0 0
        %946 = vmatpush.bf16.msra.mxu0 0
        %947 = vmatpush.bf16.msra.mxu0 0
        %948 = vmatpush.bf16.msra.mxu0 0
        %949 = vmatpush.bf16.msra.mxu0 %v940
        %950 = vmatmul.bf16.gmra.mxu0 %v937
        %v951 = vpop.f32.mrf.mxu0
        %v952 = vadd.f32 0.0, %v951
        %v953 = vpop.f32.mrf.mxu0
        %954 = vdwg.mxu0
        %956 = vrot.lane.b32.xlu0 %v840, 8
        %v957 = vpop.permute.xlu0 %956
        %960 = vrot.lane.b32.xlu0 %v896, 16
        %v961 = vpop.permute.xlu0 %960
        %964 = vrot.lane.b32.xlu0 %v952, 24
        %v965 = vpop.permute.xlu0 %964
        %v967 = vsel %vm732, %v781, %v957
        %vm968 = vcmask 130048
        %v969 = vsel %vm968, %v967, %v961
        %vm970 = vcmask 195584
        %v971 = vsel %vm970, %v969, %v965
        %v972 = vpack.c.bf16 %v971, %v971
        %v973 = vld [vmem:[#allocation7] sm:$0xf]
        %v974 = vld [vmem:[#allocation7 + $0x4] sm:$0xf]
        %v975 = vld [vmem:[#allocation7 + $0x8] sm:$0xf]
        %v976 = vld [vmem:[#allocation7 + $0xc] sm:$0xf]
        %v977 = vld [vmem:[%s8] sm:$0x1]
        %v979 = vperm.slane %v977, 0
        %v985 = vunpack.c.l.b16 %v973
        %v986 = vunpack.c.l.b16 %v974
        %v987 = vunpack.c.l.b16 %v975
        %v988 = vunpack.c.l.b16 %v976
        %v989 = vpack.c.b16 %v986, %v985
        %v990 = vpack.c.b16 %v988, %v987
        %v994 = vsel %vm671, %v972, 0
        %996 = vmatpush.bf16.msra.mxu0 0
        %997 = vmatpush.bf16.msra.mxu0 0
        %998 = vmatpush.bf16.msra.mxu0 0
        %999 = vmatpush.bf16.msra.mxu0 0
        %1000 = vmatpush.bf16.msra.mxu0 0
        %1001 = vmatpush.bf16.msra.mxu0 0
        %1002 = vmatpush.bf16.msra.mxu0 %v990
        %1003 = vmatpush.bf16.msra.mxu0 %v989
        %1004 = vmatmul.bf16.gmra.mxu0 %v994
        %v1005 = vpop.f32.mrf.mxu0
        %v1006 = vadd.f32 %v979, %v1005
        %v1007 = vpop.f32.mrf.mxu0
        %1008 = vdwg.mxu0
        %v1009 = vadd.f32 %v646, %v1006
        %v1010 = vsel %vm671, %v1009, 0.0
        %1011 = vadd.xlane.f32.xlu0 %v1010
        %v1012 = vpop.xlane.xlu0 %1011
        %v1013 = vmul.f32 %v1012, 0.03125
        %v1014 = vmul.f32 %v1009, %v1009
        %v1015 = vsel %vm671, %v1014, 0.0
        %1016 = vadd.xlane.f32.xlu0 %v1015
        %v1017 = vpop.xlane.xlu0 %1016
        %v1018 = vmul.f32 %v1017, 0.03125
        %v1019 = vmul.f32 %v1013, %v1013
        %v1020 = vsub.f32 %v1018, %v1019
        %v1021 = vmax.f32 %v1020, 0.0
        %v1022 = vsub.f32 %v1009, %v1013
        %v1023 = vadd.f32 %v1021, 1e-05
        %v1024 = vrsqrt.pop %v1023
        %v1025 = vmul.f32 %v1024, %v1023
        %v1026 = vmul.f32 %v1025, %v1024
        %v1027 = vmul.f32 0.5, %v1026
        %v1028 = vsub.f32 1.5, %v1027
        %v1029 = vmul.f32 %v1024, %v1028
        %vm1030 = vweird.f32 %v1023
        %vm1031 = vweird.f32 %v1024
        %vm1032 = vmor %vm1030, %vm1031
        %v1033 = vsel %vm1032, %v1024, %v1029
        %v1034 = vmul.f32 %v1022, %v1033
        %v1035 = vld [vmem:[%s13] sm:$0x1]
        %v1037 = vperm.slane %v1035, 0
        %v1039 = vmul.f32 %v1034, %v1037
        %v1040 = vld [vmem:[%s14] sm:$0x1]
        %v1042 = vperm.slane %v1040, 0
        %v1044 = vadd.f32 %v1039, %v1042
        %v1045 = vpack.c.bf16 %v1044, %v1044
        %v1046 = vld [vmem:[#allocation8] sm:$0xf]
        %v1047 = vld [vmem:[#allocation8 + $0x4] sm:$0xf]
        %v1048 = vld [vmem:[#allocation8 + $0x8] sm:$0xf]
        %v1049 = vld [vmem:[#allocation8 + $0xc] sm:$0xf]
        %v1050 = vld [vmem:[%s10] sm:$0x1]
        %v1052 = vperm.slane %v1050, 0
        %v1058 = vunpack.c.l.b16 %v1046
        %v1059 = vunpack.c.l.b16 %v1047
        %v1060 = vunpack.c.l.b16 %v1048
        %v1061 = vunpack.c.l.b16 %v1049
        %v1062 = vpack.c.b16 %v1059, %v1058
        %v1063 = vpack.c.b16 %v1061, %v1060
        %v1067 = vsel %vm671, %v1045, 0
        %1069 = vmatpush.bf16.msra.mxu0 0
        %1070 = vmatpush.bf16.msra.mxu0 0
        %1071 = vmatpush.bf16.msra.mxu0 0
        %1072 = vmatpush.bf16.msra.mxu0 0
        %1073 = vmatpush.bf16.msra.mxu0 0
        %1074 = vmatpush.bf16.msra.mxu0 0
        %1075 = vmatpush.bf16.msra.mxu0 %v1063
        %1076 = vmatpush.bf16.msra.mxu0 %v1062
        %1077 = vmatmul.bf16.gmra.mxu0 %v1067
        %v1078 = vpop.f32.mrf.mxu0
        %v1079 = vadd.f32 %v1052, %v1078
        %v1080 = vpop.f32.mrf.mxu0
        %1081 = vdwg.mxu0
        %v1082 = vmax.f32 %v1079, 0.0
        %v1083 = vpack.c.bf16 %v1082, %v1082
        %v1084 = vld [vmem:[%s11] sm:$0xf]
        %v1085 = vld [vmem:[%s11 + $0x4] sm:$0xf]
        %v1086 = vld [vmem:[%s11 + $0x8] sm:$0xf]
        %v1087 = vld [vmem:[%s11 + $0xc] sm:$0xf]
        %v1088 = vld [vmem:[%s11 + $0x10] sm:$0xf]
        %v1089 = vld [vmem:[%s11 + $0x14] sm:$0xf]
        %v1090 = vld [vmem:[%s11 + $0x18] sm:$0xf]
        %v1091 = vld [vmem:[%s11 + $0x1c] sm:$0xf]
        %v1092 = vld [vmem:[%s12] sm:$0x1]
        %v1094 = vperm.slane %v1092, 0
        %v1104 = vunpack.c.l.b16 %v1084
        %v1105 = vunpack.c.l.b16 %v1085
        %v1106 = vunpack.c.l.b16 %v1086
        %v1107 = vunpack.c.l.b16 %v1087
        %v1108 = vunpack.c.l.b16 %v1088
        %v1109 = vunpack.c.l.b16 %v1089
        %v1110 = vunpack.c.l.b16 %v1090
        %v1111 = vunpack.c.l.b16 %v1091
        %v1112 = vpack.c.b16 %v1105, %v1104
        %v1113 = vpack.c.b16 %v1107, %v1106
        %v1114 = vpack.c.b16 %v1109, %v1108
        %v1115 = vpack.c.b16 %v1111, %v1110
        %vm1120 = vcmask 523264
        %v1122 = vsel %vm1120, %v1083, 0
        %1124 = vmatpush.bf16.msra.mxu0 0
        %1125 = vmatpush.bf16.msra.mxu0 0
        %1126 = vmatpush.bf16.msra.mxu0 0
        %1127 = vmatpush.bf16.msra.mxu0 0
        %1128 = vmatpush.bf16.msra.mxu0 %v1115
        %1129 = vmatpush.bf16.msra.mxu0 %v1114
        %1130 = vmatpush.bf16.msra.mxu0 %v1113
        %1131 = vmatpush.bf16.msra.mxu0 %v1112
        %1132 = vmatmul.bf16.gmra.mxu0 %v1122
        %v1133 = vpop.f32.mrf.mxu0
        %v1134 = vadd.f32 %v1094, %v1133
        %v1135 = vpop.f32.mrf.mxu0
        %1136 = vdwg.mxu0
        %v1137 = vadd.f32 %v1044, %v1134
        %v1138 = vsel %vm671, %v1137, 0.0
        %1139 = vadd.xlane.f32.xlu0 %v1138
        %v1140 = vpop.xlane.xlu0 %1139
        %v1141 = vmul.f32 %v1140, 0.03125
        %v1142 = vmul.f32 %v1137, %v1137
        %v1143 = vsel %vm671, %v1142, 0.0
        %1144 = vadd.xlane.f32.xlu0 %v1143
        %v1145 = vpop.xlane.xlu0 %1144
        %v1146 = vmul.f32 %v1145, 0.03125
        %v1147 = vmul.f32 %v1141, %v1141
        %v1148 = vsub.f32 %v1146, %v1147
        %v1149 = vmax.f32 %v1148, 0.0
        %v1150 = vsub.f32 %v1137, %v1141
        %v1151 = vadd.f32 %v1149, 1e-05
        %v1152 = vrsqrt.pop %v1151
        %v1153 = vmul.f32 %v1152, %v1151
        %v1154 = vmul.f32 %v1153, %v1152
        %v1155 = vmul.f32 0.5, %v1154
        %v1156 = vsub.f32 1.5, %v1155
        %v1157 = vmul.f32 %v1152, %v1156
        %vm1158 = vweird.f32 %v1151
        %vm1159 = vweird.f32 %v1152
        %vm1160 = vmor %vm1158, %vm1159
        %v1161 = vsel %vm1160, %v1152, %v1157
        %v1162 = vmul.f32 %v1150, %v1161
        %v1163 = vld [vmem:[%s15] sm:$0x1]
        %v1165 = vperm.slane %v1163, 0
        %v1167 = vmul.f32 %v1162, %v1165
        %v1168 = vld [vmem:[%s16] sm:$0x1]
        %v1170 = vperm.slane %v1168, 0
        %v1172 = vadd.f32 %v1167, %v1170
        %1173 = vst.msk [vmem:[%s632] sm:$0xff] %vm671, %v1172
        %s1174 = sand.u32 %s414, 1
        %s1175 = scalar_lea.sflag [#allocation4], %s1174
        %s1176 = sand.u32 %s414, 1
        %s1177 = smul.addr %s1176, 8
        %s1178 = scalar_lea.vmem [#allocation10], %s1177
        // Predicated region
        $region105: #{tpu_custom_call.1} parent=87 // pred_check
          %p1179 = pneg %p424
        $region106: #{tpu_custom_call.1} parent=87 // pred_check_branch
          %1181 = sbr.rel (%p1179) target = $region108
        $region107: #{tpu_custom_call.1} parent=87 // pred_region
          %1183 = vsyncadd %s1175, 0
          %s1184 = smul.addr %s34, 8
          %s1185 = scalar_lea.hbm %s17, %s1184
          %s1187 = sshll.u32 %s1178, 4
          %s1188 = int_to_ptr.vmem [resolvable:$true] %s1187
          %s1189 = sshll.u32 %s1185, 4
          %s1190 = int_to_ptr.hbm [resolvable:$true] %s1189
          %1192 = dma.vmem_to_hbm [thread:$0]  %s1188, 128, %s1190, %s1175
        $region108: #{tpu_custom_call.1} parent=87 // pred_fallthru
          _
      $region88: #{tpu_custom_call.1} parent=5 // pred_fallthru
        _
      %p1193 = scmp.le.s32.totalorder 2, %s29
      // Predicated region
      $region109: #{tpu_custom_call.1} parent=5 // pred_check
        %p1194 = pneg %p1193
      $region110: #{tpu_custom_call.1} parent=5 // pred_check_branch
        %1196 = sbr.rel (%p1194) target = $region112
      $region111: #{tpu_custom_call.1} parent=5 // pred_region
        %s1197 = ssub.s32 %s29, 2
        // Predicated region
        $region113: #{tpu_custom_call.1} parent=111 // pred_check
          %p1198 = pneg %p430
        $region114: #{tpu_custom_call.1} parent=111 // pred_check_branch
          %1200 = sbr.rel (%p1198) target = $region116
        $region115: #{tpu_custom_call.1} parent=111 // pred_region
          %s1201 = sand.u32 %s415, 1
          %s1202 = scalar_lea.sflag [#allocation4], %s1201
          %s1203 = sand.u32 %s415, 1
          %s1204 = smul.addr %s1203, 8
          %s1205 = scalar_lea.vmem [#allocation10], %s1204
          %1207 = dma.done %s1202, 128
        $region116: #{tpu_custom_call.1} parent=111 // pred_fallthru
          _
      $region112: #{tpu_custom_call.1} parent=5 // pred_fallthru
        _
    $region6: #{tpu_custom_call.1} parent=1 // loop_footer
      %s33 = sadd.s32 1, %s29
    $region7: #{tpu_custom_call.1} parent=1 // loop_footer_branch
      %28 = sbr.rel target = $region3
    $region8: #{tpu_custom_call.1} parent=1 // loop_exit
      _
    %1208 = vsyncpa [#allocation3], 1
    %s1209 = scalar_lea.sflag [#allocation3], 1
    %1210 = vsyncpa %s1209, 1
    %1211 = vsyncpa [#allocation6], 1
    %1212 = vsyncpa [#allocation9], 1
    %1213 = vsyncpa [#allocation4], 1
    %s1214 = scalar_lea.sflag [#allocation4], 1
    %1215 = vsyncpa %s1214, 1

</llo_original>
